<compile_context>
chip_gen: v7x
topology: tpu7x:2x2x1
jax: 0.10.0
libtpu: 0.0.40
codegen_flags: <defaults>
</compile_context>

<pallas_src>
import jax
import jax.numpy as jnp
from jax.experimental import pallas as pl
from jax.experimental.pallas import tpu as pltpu

ALPHA = 0.2  # LeakyReLU negative slope for GAT attention scores


# ---------------------------------------------------------------------------
# Fused Pallas kernel: feature transform (at l==0) + L GGNN/GAT layers
# ---------------------------------------------------------------------------
def _make_kernel(emit_all):
    def kernel(nodes_ref, feat_ref, mask_ref,
               ft_wn_ref, ft_wf_ref, ft_b_ref,
               msg_w_ref, msg_b_ref, att_ref,
               gate_w_ref, gate_uzr_ref, gate_uh_ref,
               out_ref, hidden_ref, h_ref):
        # nodes_ref:   (1, N, D)       raw node states for this batch element
        # feat_ref:    (1, N, F)       concatenated feature embeddings
        # mask_ref:    (1, 2, N, N)    bf16 {0,1} in/out adjacency
        # ft_wn_ref:   (D, D)   bf16   feature_transform rows acting on nodes
        # ft_wf_ref:   (F, D)   bf16   feature_transform rows acting on features
        # ft_b_ref:    (1, D)   f32
        # msg_w_ref:   (L, D, 2D)  bf16  fused [W_in | W_out] per layer (VMEM-resident)
        # msg_b_ref:   (L, 1, 2D)  f32
        # att_ref:     (L, 4, D)   f32   GAT vectors (src_in, dst_in, src_out, dst_out)
        # gate_w_ref:  (L, 2D, 3D) bf16  fused GRU [Wz|Wr|Wh], rows = [a_in; a_out]
        # gate_uzr_ref:(L, D, 2D)  bf16  fused [Uz | Ur]
        # gate_uh_ref: (L, D, D)   bf16  Uh
        # out_ref:     (1, N, D) if not emit_all else (1, 1, N, D)
        # hidden_ref:  (1, 1, 1, D)     row-0 of this layer's output
        # h_ref:       (N, D) VMEM      node state carried across the layer grid axis
        f32 = jnp.float32
        bf16 = jnp.bfloat16
        N, D = h_ref.shape
        l = pl.program_id(1)

        # ----- layer 0: h = ReLU(nodes) @ Wn + feat @ Wf + b   (feature_transform) -----
        @pl.when(l == 0)
        def _init():
            x = jnp.maximum(nodes_ref[0], 0.0).astype(bf16)        # self.activate -> ReLU
            h0 = (jnp.dot(x, ft_wn_ref[...], preferred_element_type=f32)
                  + jnp.dot(feat_ref[0].astype(bf16), ft_wf_ref[...],
                            preferred_element_type=f32)
                  + ft_b_ref[...])
            h_ref[...] = h0

        h = h_ref[...]                                             # (N, D) f32
        h_bf = h.astype(bf16)
        m_in = mask_ref[0, 0].astype(f32)                          # {0,1}
        m_out = mask_ref[0, 1].astype(f32)

        # Fused in/out edge message transform: one wide bf16 MXU dot -> (N, 2D)
        msg = (jnp.dot(h_bf, msg_w_ref[l], preferred_element_type=f32)
               + msg_b_ref[l]).astype(bf16)
        msg_in = msg[:, :D]
        msg_out = msg[:, D:]

        # GAT attention scores on the VPU (lane reductions), not the MXU.
        att = att_ref[l]                                           # (4, D) f32
        s_src_in = jnp.sum(h * att[0:1, :], axis=-1, keepdims=True)   # (N, 1)
        s_dst_in = jnp.sum(h * att[1:2, :], axis=-1, keepdims=True)
        s_src_out = jnp.sum(h * att[2:3, :], axis=-1, keepdims=True)
        s_dst_out = jnp.sum(h * att[3:4, :], axis=-1, keepdims=True)

        def gat_aggregate(m, msg_d, s_src_col, s_dst_col):
            e = s_src_col + s_dst_col.reshape(1, N)                # (N, N): a_src.h_i + a_dst.h_j
            e = jnp.where(e > 0, e, ALPHA * e)                     # LeakyReLU
            e = e + (m - 1.0) * 1e9                                # additive bias: 0 edge, -1e9 off
            e = e - jnp.max(e, axis=-1, keepdims=True)             # stable softmax
            p = jnp.exp(e) * m                                     # isolated rows -> all-zero p
            denom = jnp.sum(p, axis=-1, keepdims=True) + 1e-9
            out = jnp.dot(p.astype(bf16), msg_d, preferred_element_type=f32)   # (N, D)
            return out * pl.reciprocal(denom, approx=True)         # scale (N,D), not (N,N)

        a_in = gat_aggregate(m_in, msg_in, s_src_in, s_dst_in)
        a_out = gat_aggregate(m_out, msg_out, s_src_out, s_dst_out)

        # Fused GRU: ga = [a_in|a_out] @ [Wz|Wr|Wh] done as two row-block dots (no concat),
        # guzr = h @ [Uz|Ur]; only the r-dependent Uh dot stays separate.
        gw = gate_w_ref[l]                                         # (2D, 3D) bf16
        ga = (jnp.dot(a_in.astype(bf16), gw[:D, :], preferred_element_type=f32)
              + jnp.dot(a_out.astype(bf16), gw[D:, :], preferred_element_type=f32))  # (N, 3D)
        guzr = jnp.dot(h_bf, gate_uzr_ref[l], preferred_element_type=f32)             # (N, 2D)

        z = jax.nn.sigmoid(ga[:, :D] + guzr[:, :D])
        r = jax.nn.sigmoid(ga[:, D:2 * D] + guzr[:, D:])
        h_tilde = jnp.tanh(ga[:, 2 * D:]
                           + jnp.dot((r * h).astype(bf16), gate_uh_ref[l],
                                     preferred_element_type=f32))
        h_new = (1.0 - z) * h + z * h_tilde

        h_ref[...] = h_new                                         # carry to next layer
        if emit_all:
            out_ref[0, 0] = h_new                                  # per-layer output block
        else:
            out_ref[0] = h_new                                     # resident across l -> 1 writeback/b
        hidden_ref[0, 0] = h_new[0:1, :]                           # row 0 -> hidden slab
    return kernel


def _ggnn_stack(nodes, feat_hidden, masks, params, emit_all):
    B, N, D = nodes.shape
    F = feat_hidden.shape[-1]
    L = params['msg_w'].shape[0]

    if emit_all:
        out_shape0 = jax.ShapeDtypeStruct((L, B, N, D), jnp.float32)
        out_spec0 = pl.BlockSpec((1, 1, N, D), lambda b, l: (l, b, 0, 0))
    else:
        out_shape0 = jax.ShapeDtypeStruct((B, N, D), jnp.float32)
        out_spec0 = pl.BlockSpec((1, N, D), lambda b, l: (b, 0, 0))   # resident over l

    return pl.pallas_call(
        _make_kernel(emit_all),
        out_shape=(out_shape0,
                   jax.ShapeDtypeStruct((L, B, 1, D), jnp.float32)),   # hidden slab
        grid=(B, L),
        in_specs=[
            pl.BlockSpec((1, N, D), lambda b, l: (b, 0, 0)),           # nodes (per-b)
            pl.BlockSpec((1, N, F), lambda b, l: (b, 0, 0)),           # feat_hidden (per-b)
            pl.BlockSpec((1, 2, N, N), lambda b, l: (b, 0, 0, 0)),     # bf16 masks (per-b)
            pl.BlockSpec((D, D), lambda b, l: (0, 0)),                 # ft_wn (constant)
            pl.BlockSpec((F, D), lambda b, l: (0, 0)),                 # ft_wf (constant)
            pl.BlockSpec((1, D), lambda b, l: (0, 0)),                 # ft_b  (constant)
            # per-layer weights: full-L blocks, constant index maps -> fetched once, VMEM-resident
            pl.BlockSpec((L, D, 2 * D), lambda b, l: (0, 0, 0)),       # msg_w
            pl.BlockSpec((L, 1, 2 * D), lambda b, l: (0, 0, 0)),       # msg_b
            pl.BlockSpec((L, 4, D), lambda b, l: (0, 0, 0)),           # att
            pl.BlockSpec((L, 2 * D, 3 * D), lambda b, l: (0, 0, 0)),   # gate_w
            pl.BlockSpec((L, D, 2 * D), lambda b, l: (0, 0, 0)),       # gate_uzr
            pl.BlockSpec((L, D, D), lambda b, l: (0, 0, 0)),           # gate_uh
        ],
        out_specs=(out_spec0,
                   pl.BlockSpec((1, 1, 1, D), lambda b, l: (l, b, 0, 0))),
        scratch_shapes=[pltpu.VMEM((N, D), jnp.float32)],
        compiler_params=pltpu.CompilerParams(
            dimension_semantics=("parallel", "arbitrary"),
            vmem_limit_bytes=48 * 1024 * 1024),
    )(nodes, feat_hidden, masks,
      params['ft_wn'], params['ft_wf'], params['ft_b'],
      params['msg_w'], params['msg_b'], params['att'],
      params['gate_w'], params['gate_uzr'], params['gate_uh'])


# ---------------------------------------------------------------------------
# Parameter construction (deterministic, synthetic; fused bf16 layouts)
# ---------------------------------------------------------------------------
def _uniform(key, shape, scale):
    return jax.random.uniform(key, shape, jnp.float32, -scale, scale)


def init_params(key, n_layer, d_model, d_feat_vec, feat_vocab):
    D = d_model
    F = d_feat_vec * len(feat_vocab)
    L = n_layer
    bf16 = jnp.bfloat16
    keys = jax.random.split(key, 10)
    params = {}
    # feature embeddings; padding_idx = 0 zeroed ONCE here (hoisted out of forward)
    emb_keys = jax.random.split(keys[0], len(feat_vocab))
    params['feat_embs'] = [
        _uniform(k, (v, d_feat_vec), 0.1).at[0].set(0.0)
        for k, v in zip(emb_keys, feat_vocab)
    ]
    # feature_transform: nn.Linear(D + F, D), split into row blocks [Wn; Wf]
    s = 1.0 / jnp.sqrt(D + F)
    params['ft_wn'] = _uniform(keys[1], (D, D), s).astype(bf16)
    params['ft_wf'] = _uniform(keys[2], (F, D), s).astype(bf16)
    params['ft_b'] = _uniform(keys[3], (1, D), s)
    # per-layer weights, stacked along a leading L axis in already-fused layouts
    sd = 1.0 / jnp.sqrt(D)
    params['msg_w'] = _uniform(keys[4], (L, D, 2 * D), sd).astype(bf16)        # [W_in | W_out]
    params['msg_b'] = _uniform(keys[5], (L, 1, 2 * D), sd)
    params['att'] = _uniform(keys[6], (L, 4, D), sd)                           # src_in,dst_in,src_out,dst_out
    params['gate_w'] = _uniform(keys[7], (L, 2 * D, 3 * D),
                                1.0 / jnp.sqrt(2 * D)).astype(bf16)            # [Wz|Wr|Wh]
    params['gate_uzr'] = _uniform(keys[8], (L, D, 2 * D), sd).astype(bf16)     # [Uz|Ur]
    params['gate_uh'] = _uniform(keys[9], (L, D, D), sd).astype(bf16)
    return params


# ---------------------------------------------------------------------------
# Encoder forward (mirrors GGNNEncoder.forward)
# ---------------------------------------------------------------------------
def ggnn_encoder_forward(params, nodes, mask, feat_seqs, node_type, layer_attn=False):
    del node_type  # passed to the layer in the reference; layer source not provided
    mask_in, mask_out = mask
    # bf16 masks, stacked per batch element so each (b) step DMAs one contiguous block
    masks = jnp.stack([mask_in, mask_out], axis=1).astype(jnp.bfloat16)   # (B, 2, N, N)
    # feature embeddings (tables already have padding row zeroed)
    feat_hidden = jnp.concatenate(
        [jnp.take(tbl, ids, axis=0) for tbl, ids in zip(params['feat_embs'], feat_seqs)],
        axis=2)
    out, hidden_slab = _ggnn_stack(nodes, feat_hidden, masks, params, emit_all=layer_attn)
    L = hidden_slab.shape[0]
    # hidden = [layer_output.transpose(0,1)[0]]  -> first node per batch, per layer
    hidden = [hidden_slab[l, :, 0, :] for l in range(L)]
    if layer_attn:
        return [out[l] for l in range(L)], hidden
    return out, hidden


# ---------------------------------------------------------------------------
# Demo
# ---------------------------------------------------------------------------
if __name__ == "__main__":
    B, N, D = 2, 8, 32
    n_layer = 2
    d_feat_vec = 8
    feat_vocab = [11, 13]

    key = jax.random.PRNGKey(0)
    k_par, k_nodes, k_min, k_mout, k_f1, k_f2, k_type = jax.random.split(key, 7)

    params = init_params(k_par, n_layer, D, d_feat_vec, feat_vocab)

    nodes = jax.random.normal(k_nodes, (B, N, D), jnp.float32)
    mask_in = jax.random.bernoulli(k_min, 0.5, (B, N, N)).astype(jnp.float32)
    mask_out = jax.random.bernoulli(k_mout, 0.5, (B, N, N)).astype(jnp.float32)
    # add self loops so no node is fully isolated
    eye = jnp.eye(N, dtype=jnp.float32)[None]
    mask_in = jnp.clip(mask_in + eye, 0.0, 1.0)
    mask_out = jnp.clip(mask_out + eye, 0.0, 1.0)

    feat_seqs = [
        jax.random.randint(k_f1, (B, N), 0, feat_vocab[0], jnp.int32),
        jax.random.randint(k_f2, (B, N), 0, feat_vocab[1], jnp.int32),
    ]
    node_type = jax.random.randint(k_type, (B, N), 0, 3, jnp.int32)

    # layer_attn=False path: final-layer output + per-layer hidden
    node_output, hidden = ggnn_encoder_forward(
        params, nodes, (mask_in, mask_out), feat_seqs, node_type, layer_attn=False)
    jax.block_until_ready(node_output)
    for h in hidden:
        jax.block_until_ready(h)
    assert node_output.shape == (B, N, D)
    assert len(hidden) == n_layer and hidden[0].shape == (B, D)
    assert bool(jnp.all(jnp.isfinite(node_output)))

    # layer_attn=True path: all per-layer outputs + hidden
    all_outputs, hidden2 = ggnn_encoder_forward(
        params, nodes, (mask_in, mask_out), feat_seqs, node_type, layer_attn=True)
    jax.block_until_ready(all_outputs[-1])
    assert len(all_outputs) == n_layer and all_outputs[-1].shape == (B, N, D)
    assert bool(jnp.all(jnp.isfinite(all_outputs[-1])))
    # both paths agree on the final layer
    assert bool(jnp.allclose(all_outputs[-1], node_output, atol=1e-5, rtol=1e-5))

    print("KERNEL_OK")
</pallas_src>

<mosaic_0001>
module attributes {stable_mosaic.version = 11 : i64} {
  func.func @kernel(%arg0: i32, %arg1: i32, %arg2: memref<1x8x32xf32, #tpu.memory_space<vmem>>, %arg3: memref<1x8x16xf32, #tpu.memory_space<vmem>>, %arg4: memref<1x2x8x8xbf16, #tpu.memory_space<vmem>>, %arg5: memref<32x32xbf16, #tpu.memory_space<vmem>>, %arg6: memref<16x32xbf16, #tpu.memory_space<vmem>>, %arg7: memref<1x32xf32, #tpu.memory_space<vmem>>, %arg8: memref<2x32x64xbf16, #tpu.memory_space<vmem>>, %arg9: memref<2x1x64xf32, #tpu.memory_space<vmem>>, %arg10: memref<2x4x32xf32, #tpu.memory_space<vmem>>, %arg11: memref<2x64x96xbf16, #tpu.memory_space<vmem>>, %arg12: memref<2x32x64xbf16, #tpu.memory_space<vmem>>, %arg13: memref<2x32x32xbf16, #tpu.memory_space<vmem>>, %arg14: memref<1x8x32xf32, #tpu.memory_space<vmem>>, %arg15: memref<1x1x1x32xf32, #tpu.memory_space<vmem>>, %arg16: memref<8x32xf32, #tpu.memory_space<vmem>>) attributes {dimension_semantics = [#tpu.dimension_semantics<parallel>, #tpu.dimension_semantics<arbitrary>], iteration_bounds = array<i64: 2, 2>, scalar_prefetch = 0 : i64, scratch_operands = 1 : i64, tpu.core_type = #tpu.core_type<tc>, window_params = [{transform_indices = @transform_0, window_bounds = array<i64: 1, 8, 32>}, {transform_indices = @transform_1, window_bounds = array<i64: 1, 8, 16>}, {transform_indices = @transform_2, window_bounds = array<i64: 1, 2, 8, 8>}, {pipeline_mode = #tpu.pipeline_mode<synchronous>, transform_indices = @transform_3, window_bounds = array<i64: 32, 32>}, {pipeline_mode = #tpu.pipeline_mode<synchronous>, transform_indices = @transform_4, window_bounds = array<i64: 16, 32>}, {pipeline_mode = #tpu.pipeline_mode<synchronous>, transform_indices = @transform_5, window_bounds = array<i64: 1, 32>}, {pipeline_mode = #tpu.pipeline_mode<synchronous>, transform_indices = @transform_6, window_bounds = array<i64: 2, 32, 64>}, {pipeline_mode = #tpu.pipeline_mode<synchronous>, transform_indices = @transform_7, window_bounds = array<i64: 2, 1, 64>}, {pipeline_mode = #tpu.pipeline_mode<synchronous>, transform_indices = @transform_8, window_bounds = array<i64: 2, 4, 32>}, {pipeline_mode = #tpu.pipeline_mode<synchronous>, transform_indices = @transform_9, window_bounds = array<i64: 2, 64, 96>}, {pipeline_mode = #tpu.pipeline_mode<synchronous>, transform_indices = @transform_10, window_bounds = array<i64: 2, 32, 64>}, {pipeline_mode = #tpu.pipeline_mode<synchronous>, transform_indices = @transform_11, window_bounds = array<i64: 2, 32, 32>}, {transform_indices = @transform_12, window_bounds = array<i64: 1, 8, 32>}, {transform_indices = @transform_13, window_bounds = array<i64: 1, 1, 1, 32>}]} {
    %c0_i32 = arith.constant 0 : i32
    %0 = arith.cmpi eq, %arg1, %c0_i32 : i32
    %1 = arith.extui %0 : i1 to i32
    %c0_i32_0 = arith.constant 0 : i32
    %2 = arith.cmpi ne, %1, %c0_i32_0 : i32
    scf.if %2 {
      %c0_57 = arith.constant 0 : index
      %c0_58 = arith.constant 0 : index
      %c0_59 = arith.constant 0 : index
      %156 = vector.load %arg2[%c0_57, %c0_58, %c0_59] : memref<1x8x32xf32, #tpu.memory_space<vmem>>, vector<1x8x32xf32>
      %157 = vector.shape_cast %156 : vector<1x8x32xf32> to vector<8x32xf32>
      %cst_60 = arith.constant 0.000000e+00 : f32
      %158 = vector.broadcast %cst_60 : f32 to vector<8x32xf32>
      %159 = arith.maximumf %157, %158 : vector<8x32xf32>
      %160 = arith.truncf %159 : vector<8x32xf32> to vector<8x32xbf16>
      %c0_61 = arith.constant 0 : index
      %c0_62 = arith.constant 0 : index
      %161 = vector.load %arg5[%c0_61, %c0_62] : memref<32x32xbf16, #tpu.memory_space<vmem>>, vector<32x32xbf16>
      %cst_63 = arith.constant dense<0.000000e+00> : vector<8x32xf32>
      %162 = tpu.matmul %160, %161, %cst_63 {dimension_numbers = #tpu.dot_dimension_numbers<[1], [0], [0], [1], [0, 0, 1, 1], [], []>} : vector<8x32xbf16>, vector<32x32xbf16>, vector<8x32xf32> -> vector<8x32xf32>
      %c0_64 = arith.constant 0 : index
      %c0_65 = arith.constant 0 : index
      %c0_66 = arith.constant 0 : index
      %163 = vector.load %arg3[%c0_64, %c0_65, %c0_66] : memref<1x8x16xf32, #tpu.memory_space<vmem>>, vector<1x8x16xf32>
      %164 = vector.shape_cast %163 : vector<1x8x16xf32> to vector<8x16xf32>
      %165 = arith.truncf %164 : vector<8x16xf32> to vector<8x16xbf16>
      %c0_67 = arith.constant 0 : index
      %c0_68 = arith.constant 0 : index
      %166 = vector.load %arg6[%c0_67, %c0_68] : memref<16x32xbf16, #tpu.memory_space<vmem>>, vector<16x32xbf16>
      %cst_69 = arith.constant dense<0.000000e+00> : vector<8x32xf32>
      %167 = tpu.matmul %165, %166, %cst_69 {dimension_numbers = #tpu.dot_dimension_numbers<[1], [0], [0], [1], [0, 0, 1, 1], [], []>} : vector<8x16xbf16>, vector<16x32xbf16>, vector<8x32xf32> -> vector<8x32xf32>
      %168 = arith.addf %162, %167 : vector<8x32xf32>
      %c0_70 = arith.constant 0 : index
      %c0_71 = arith.constant 0 : index
      %169 = vector.load %arg7[%c0_70, %c0_71] : memref<1x32xf32, #tpu.memory_space<vmem>>, vector<1x32xf32>
      %170 = vector.broadcast %169 : vector<1x32xf32> to vector<8x32xf32>
      %171 = arith.addf %168, %170 : vector<8x32xf32>
      %c0_72 = arith.constant 0 : index
      %c0_73 = arith.constant 0 : index
      %172 = vector.load %arg16[%c0_72, %c0_73] : memref<8x32xf32, #tpu.memory_space<vmem>>, vector<8x32xf32>
      tpu.vector_store %arg16[%c0_72, %c0_73], %171 {strides = array<i32>} : memref<8x32xf32, #tpu.memory_space<vmem>>, vector<8x32xf32>,
    } else {
    }
    %c0 = arith.constant 0 : index
    %c0_1 = arith.constant 0 : index
    %3 = vector.load %arg16[%c0, %c0_1] : memref<8x32xf32, #tpu.memory_space<vmem>>, vector<8x32xf32>
    %4 = arith.truncf %3 : vector<8x32xf32> to vector<8x32xbf16>
    %c0_2 = arith.constant 0 : index
    %c0_3 = arith.constant 0 : index
    %c0_4 = arith.constant 0 : index
    %c0_5 = arith.constant 0 : index
    %5 = vector.load %arg4[%c0_2, %c0_3, %c0_4, %c0_5] : memref<1x2x8x8xbf16, #tpu.memory_space<vmem>>, vector<1x1x8x8xbf16>
    %6 = vector.shape_cast %5 : vector<1x1x8x8xbf16> to vector<8x8xbf16>
    %7 = arith.extf %6 : vector<8x8xbf16> to vector<8x8xf32>
    %c0_6 = arith.constant 0 : index
    %c1 = arith.constant 1 : index
    %c0_7 = arith.constant 0 : index
    %c0_8 = arith.constant 0 : index
    %8 = vector.load %arg4[%c0_6, %c1, %c0_7, %c0_8] : memref<1x2x8x8xbf16, #tpu.memory_space<vmem>>, vector<1x1x8x8xbf16>
    %9 = vector.shape_cast %8 : vector<1x1x8x8xbf16> to vector<8x8xbf16>
    %10 = arith.extf %9 : vector<8x8xbf16> to vector<8x8xf32>
    %11 = arith.index_cast %arg1 : i32 to index
    %c0_9 = arith.constant 0 : index
    %c0_10 = arith.constant 0 : index
    %12 = vector.load %arg8[%11, %c0_9, %c0_10] : memref<2x32x64xbf16, #tpu.memory_space<vmem>>, vector<1x32x64xbf16>
    %13 = vector.shape_cast %12 : vector<1x32x64xbf16> to vector<32x64xbf16>
    %cst = arith.constant dense<0.000000e+00> : vector<8x64xf32>
    %14 = tpu.matmul %4, %13, %cst {dimension_numbers = #tpu.dot_dimension_numbers<[1], [0], [0], [1], [0, 0, 1, 1], [], []>} : vector<8x32xbf16>, vector<32x64xbf16>, vector<8x64xf32> -> vector<8x64xf32>
    %15 = arith.index_cast %arg1 : i32 to index
    %c0_11 = arith.constant 0 : index
    %c0_12 = arith.constant 0 : index
    %16 = vector.load %arg9[%15, %c0_11, %c0_12] : memref<2x1x64xf32, #tpu.memory_space<vmem>>, vector<1x1x64xf32>
    %17 = vector.shape_cast %16 : vector<1x1x64xf32> to vector<1x64xf32>
    %18 = vector.broadcast %17 : vector<1x64xf32> to vector<8x64xf32>
    %19 = arith.addf %14, %18 : vector<8x64xf32>
    %20 = arith.truncf %19 : vector<8x64xf32> to vector<8x64xbf16>
    %21 = vector.extract_strided_slice %20 {offsets = [0, 0], sizes = [8, 32], strides = [1, 1]} : vector<8x64xbf16> to vector<8x32xbf16>
    %22 = vector.extract_strided_slice %20 {offsets = [0, 32], sizes = [8, 32], strides = [1, 1]} : vector<8x64xbf16> to vector<8x32xbf16>
    %23 = arith.index_cast %arg1 : i32 to index
    %c0_13 = arith.constant 0 : index
    %c0_14 = arith.constant 0 : index
    %24 = vector.load %arg10[%23, %c0_13, %c0_14] : memref<2x4x32xf32, #tpu.memory_space<vmem>>, vector<1x4x32xf32>
    %25 = vector.shape_cast %24 : vector<1x4x32xf32> to vector<4x32xf32>
    %26 = vector.extract_strided_slice %25 {offsets = [0, 0], sizes = [1, 32], strides = [1, 1]} : vector<4x32xf32> to vector<1x32xf32>
    %27 = vector.broadcast %26 : vector<1x32xf32> to vector<8x32xf32>
    %28 = arith.mulf %3, %27 : vector<8x32xf32>
    %cst_15 = arith.constant dense<0.000000e+00> : vector<8xf32>
    %29 = vector.multi_reduction <add>, %28, %cst_15 [1] : vector<8x32xf32> to vector<8xf32>
    %30 = vector.shape_cast %29 : vector<8xf32> to vector<8x1xf32>
    %31 = vector.extract_strided_slice %25 {offsets = [1, 0], sizes = [1, 32], strides = [1, 1]} : vector<4x32xf32> to vector<1x32xf32>
    %32 = vector.broadcast %31 : vector<1x32xf32> to vector<8x32xf32>
    %33 = arith.mulf %3, %32 : vector<8x32xf32>
    %cst_16 = arith.constant dense<0.000000e+00> : vector<8xf32>
    %34 = vector.multi_reduction <add>, %33, %cst_16 [1] : vector<8x32xf32> to vector<8xf32>
    %35 = vector.shape_cast %34 : vector<8xf32> to vector<8x1xf32>
    %36 = vector.extract_strided_slice %25 {offsets = [2, 0], sizes = [1, 32], strides = [1, 1]} : vector<4x32xf32> to vector<1x32xf32>
    %37 = vector.broadcast %36 : vector<1x32xf32> to vector<8x32xf32>
    %38 = arith.mulf %3, %37 : vector<8x32xf32>
    %cst_17 = arith.constant dense<0.000000e+00> : vector<8xf32>
    %39 = vector.multi_reduction <add>, %38, %cst_17 [1] : vector<8x32xf32> to vector<8xf32>
    %40 = vector.shape_cast %39 : vector<8xf32> to vector<8x1xf32>
    %41 = vector.extract_strided_slice %25 {offsets = [3, 0], sizes = [1, 32], strides = [1, 1]} : vector<4x32xf32> to vector<1x32xf32>
    %42 = vector.broadcast %41 : vector<1x32xf32> to vector<8x32xf32>
    %43 = arith.mulf %3, %42 : vector<8x32xf32>
    %cst_18 = arith.constant dense<0.000000e+00> : vector<8xf32>
    %44 = vector.multi_reduction <add>, %43, %cst_18 [1] : vector<8x32xf32> to vector<8xf32>
    %45 = vector.shape_cast %44 : vector<8xf32> to vector<8x1xf32>
    %46 = vector.shape_cast %35 : vector<8x1xf32> to vector<1x8xf32>
    %47 = vector.broadcast %30 : vector<8x1xf32> to vector<8x8xf32>
    %48 = vector.broadcast %46 : vector<1x8xf32> to vector<8x8xf32>
    %49 = arith.addf %47, %48 : vector<8x8xf32>
    %cst_19 = arith.constant 0.000000e+00 : f32
    %50 = vector.broadcast %cst_19 : f32 to vector<8x8xf32>
    %51 = arith.cmpf ogt, %49, %50 : vector<8x8xf32>
    %cst_20 = arith.constant 2.000000e-01 : f32
    %52 = vector.broadcast %cst_20 : f32 to vector<8x8xf32>
    %53 = arith.mulf %52, %49 : vector<8x8xf32>
    %54 = arith.select %51, %49, %53 : vector<8x8xi1>, vector<8x8xf32>
    %cst_21 = arith.constant 1.000000e+00 : f32
    %55 = vector.broadcast %cst_21 : f32 to vector<8x8xf32>
    %56 = arith.subf %7, %55 : vector<8x8xf32>
    %cst_22 = arith.constant 1.000000e+09 : f32
    %57 = vector.broadcast %cst_22 : f32 to vector<8x8xf32>
    %58 = arith.mulf %56, %57 : vector<8x8xf32>
    %59 = arith.addf %54, %58 : vector<8x8xf32>
    %cst_23 = arith.constant dense<0xFF800000> : vector<8xf32>
    %60 = vector.multi_reduction <maximumf>, %59, %cst_23 [1] : vector<8x8xf32> to vector<8xf32>
    %61 = vector.shape_cast %60 : vector<8xf32> to vector<8x1xf32>
    %62 = vector.broadcast %61 : vector<8x1xf32> to vector<8x8xf32>
    %63 = arith.subf %59, %62 : vector<8x8xf32>
    %64 = math.exp %63 : vector<8x8xf32>
    %65 = arith.mulf %64, %7 : vector<8x8xf32>
    %cst_24 = arith.constant dense<0.000000e+00> : vector<8xf32>
    %66 = vector.multi_reduction <add>, %65, %cst_24 [1] : vector<8x8xf32> to vector<8xf32>
    %67 = vector.shape_cast %66 : vector<8xf32> to vector<8x1xf32>
    %cst_25 = arith.constant 9.99999971E-10 : f32
    %68 = vector.broadcast %cst_25 : f32 to vector<8x1xf32>
    %69 = arith.addf %67, %68 : vector<8x1xf32>
    %70 = arith.truncf %65 : vector<8x8xf32> to vector<8x8xbf16>
    %cst_26 = arith.constant dense<0.000000e+00> : vector<8x32xf32>
    %71 = tpu.matmul %70, %21, %cst_26 {dimension_numbers = #tpu.dot_dimension_numbers<[1], [0], [0], [1], [0, 0, 1, 1], [], []>} : vector<8x8xbf16>, vector<8x32xbf16>, vector<8x32xf32> -> vector<8x32xf32>
    %72 = tpu.reciprocal %69 {approx = true} : vector<8x1xf32> -> vector<8x1xf32>
    %73 = vector.broadcast %72 : vector<8x1xf32> to vector<8x32xf32>
    %74 = arith.mulf %71, %73 : vector<8x32xf32>
    %75 = vector.shape_cast %45 : vector<8x1xf32> to vector<1x8xf32>
    %76 = vector.broadcast %40 : vector<8x1xf32> to vector<8x8xf32>
    %77 = vector.broadcast %75 : vector<1x8xf32> to vector<8x8xf32>
    %78 = arith.addf %76, %77 : vector<8x8xf32>
    %cst_27 = arith.constant 0.000000e+00 : f32
    %79 = vector.broadcast %cst_27 : f32 to vector<8x8xf32>
    %80 = arith.cmpf ogt, %78, %79 : vector<8x8xf32>
    %cst_28 = arith.constant 2.000000e-01 : f32
    %81 = vector.broadcast %cst_28 : f32 to vector<8x8xf32>
    %82 = arith.mulf %81, %78 : vector<8x8xf32>
    %83 = arith.select %80, %78, %82 : vector<8x8xi1>, vector<8x8xf32>
    %cst_29 = arith.constant 1.000000e+00 : f32
    %84 = vector.broadcast %cst_29 : f32 to vector<8x8xf32>
    %85 = arith.subf %10, %84 : vector<8x8xf32>
    %cst_30 = arith.constant 1.000000e+09 : f32
    %86 = vector.broadcast %cst_30 : f32 to vector<8x8xf32>
    %87 = arith.mulf %85, %86 : vector<8x8xf32>
    %88 = arith.addf %83, %87 : vector<8x8xf32>
    %cst_31 = arith.constant dense<0xFF800000> : vector<8xf32>
    %89 = vector.multi_reduction <maximumf>, %88, %cst_31 [1] : vector<8x8xf32> to vector<8xf32>
    %90 = vector.shape_cast %89 : vector<8xf32> to vector<8x1xf32>
    %91 = vector.broadcast %90 : vector<8x1xf32> to vector<8x8xf32>
    %92 = arith.subf %88, %91 : vector<8x8xf32>
    %93 = math.exp %92 : vector<8x8xf32>
    %94 = arith.mulf %93, %10 : vector<8x8xf32>
    %cst_32 = arith.constant dense<0.000000e+00> : vector<8xf32>
    %95 = vector.multi_reduction <add>, %94, %cst_32 [1] : vector<8x8xf32> to vector<8xf32>
    %96 = vector.shape_cast %95 : vector<8xf32> to vector<8x1xf32>
    %cst_33 = arith.constant 9.99999971E-10 : f32
    %97 = vector.broadcast %cst_33 : f32 to vector<8x1xf32>
    %98 = arith.addf %96, %97 : vector<8x1xf32>
    %99 = arith.truncf %94 : vector<8x8xf32> to vector<8x8xbf16>
    %cst_34 = arith.constant dense<0.000000e+00> : vector<8x32xf32>
    %100 = tpu.matmul %99, %22, %cst_34 {dimension_numbers = #tpu.dot_dimension_numbers<[1], [0], [0], [1], [0, 0, 1, 1], [], []>} : vector<8x8xbf16>, vector<8x32xbf16>, vector<8x32xf32> -> vector<8x32xf32>
    %101 = tpu.reciprocal %98 {approx = true} : vector<8x1xf32> -> vector<8x1xf32>
    %102 = vector.broadcast %101 : vector<8x1xf32> to vector<8x32xf32>
    %103 = arith.mulf %100, %102 : vector<8x32xf32>
    %104 = arith.index_cast %arg1 : i32 to index
    %c0_35 = arith.constant 0 : index
    %c0_36 = arith.constant 0 : index
    %105 = vector.load %arg11[%104, %c0_35, %c0_36] : memref<2x64x96xbf16, #tpu.memory_space<vmem>>, vector<1x64x96xbf16>
    %106 = vector.shape_cast %105 : vector<1x64x96xbf16> to vector<64x96xbf16>
    %107 = arith.truncf %74 : vector<8x32xf32> to vector<8x32xbf16>
    %108 = vector.extract_strided_slice %106 {offsets = [0, 0], sizes = [32, 96], strides = [1, 1]} : vector<64x96xbf16> to vector<32x96xbf16>
    %cst_37 = arith.constant dense<0.000000e+00> : vector<8x96xf32>
    %109 = tpu.matmul %107, %108, %cst_37 {dimension_numbers = #tpu.dot_dimension_numbers<[1], [0], [0], [1], [0, 0, 1, 1], [], []>} : vector<8x32xbf16>, vector<32x96xbf16>, vector<8x96xf32> -> vector<8x96xf32>
    %110 = arith.truncf %103 : vector<8x32xf32> to vector<8x32xbf16>
    %111 = vector.extract_strided_slice %106 {offsets = [32, 0], sizes = [32, 96], strides = [1, 1]} : vector<64x96xbf16> to vector<32x96xbf16>
    %cst_38 = arith.constant dense<0.000000e+00> : vector<8x96xf32>
    %112 = tpu.matmul %110, %111, %cst_38 {dimension_numbers = #tpu.dot_dimension_numbers<[1], [0], [0], [1], [0, 0, 1, 1], [], []>} : vector<8x32xbf16>, vector<32x96xbf16>, vector<8x96xf32> -> vector<8x96xf32>
    %113 = arith.addf %109, %112 : vector<8x96xf32>
    %114 = arith.index_cast %arg1 : i32 to index
    %c0_39 = arith.constant 0 : index
    %c0_40 = arith.constant 0 : index
    %115 = vector.load %arg12[%114, %c0_39, %c0_40] : memref<2x32x64xbf16, #tpu.memory_space<vmem>>, vector<1x32x64xbf16>
    %116 = vector.shape_cast %115 : vector<1x32x64xbf16> to vector<32x64xbf16>
    %cst_41 = arith.constant dense<0.000000e+00> : vector<8x64xf32>
    %117 = tpu.matmul %4, %116, %cst_41 {dimension_numbers = #tpu.dot_dimension_numbers<[1], [0], [0], [1], [0, 0, 1, 1], [], []>} : vector<8x32xbf16>, vector<32x64xbf16>, vector<8x64xf32> -> vector<8x64xf32>
    %118 = vector.extract_strided_slice %113 {offsets = [0, 0], sizes = [8, 32], strides = [1, 1]} : vector<8x96xf32> to vector<8x32xf32>
    %119 = vector.extract_strided_slice %117 {offsets = [0, 0], sizes = [8, 32], strides = [1, 1]} : vector<8x64xf32> to vector<8x32xf32>
    %120 = arith.addf %118, %119 : vector<8x32xf32>
    %121 = arith.negf %120 : vector<8x32xf32>
    %122 = math.exp %121 : vector<8x32xf32>
    %cst_42 = arith.constant 1.000000e+00 : f32
    %123 = vector.broadcast %cst_42 : f32 to vector<8x32xf32>
    %124 = arith.addf %123, %122 : vector<8x32xf32>
    %125 = arith.divf %123, %124 : vector<8x32xf32>
    %126 = vector.extract_strided_slice %113 {offsets = [0, 32], sizes = [8, 32], strides = [1, 1]} : vector<8x96xf32> to vector<8x32xf32>
    %127 = vector.extract_strided_slice %117 {offsets = [0, 32], sizes = [8, 32], strides = [1, 1]} : vector<8x64xf32> to vector<8x32xf32>
    %128 = arith.addf %126, %127 : vector<8x32xf32>
    %129 = arith.negf %128 : vector<8x32xf32>
    %130 = math.exp %129 : vector<8x32xf32>
    %cst_43 = arith.constant 1.000000e+00 : f32
    %131 = vector.broadcast %cst_43 : f32 to vector<8x32xf32>
    %132 = arith.addf %131, %130 : vector<8x32xf32>
    %133 = arith.divf %131, %132 : vector<8x32xf32>
    %134 = vector.extract_strided_slice %113 {offsets = [0, 64], sizes = [8, 32], strides = [1, 1]} : vector<8x96xf32> to vector<8x32xf32>
    %135 = arith.mulf %133, %3 : vector<8x32xf32>
    %136 = arith.truncf %135 : vector<8x32xf32> to vector<8x32xbf16>
    %137 = arith.index_cast %arg1 : i32 to index
    %c0_44 = arith.constant 0 : index
    %c0_45 = arith.constant 0 : index
    %138 = vector.load %arg13[%137, %c0_44, %c0_45] : memref<2x32x32xbf16, #tpu.memory_space<vmem>>, vector<1x32x32xbf16>
    %139 = vector.shape_cast %138 : vector<1x32x32xbf16> to vector<32x32xbf16>
    %cst_46 = arith.constant dense<0.000000e+00> : vector<8x32xf32>
    %140 = tpu.matmul %136, %139, %cst_46 {dimension_numbers = #tpu.dot_dimension_numbers<[1], [0], [0], [1], [0, 0, 1, 1], [], []>} : vector<8x32xbf16>, vector<32x32xbf16>, vector<8x32xf32> -> vector<8x32xf32>
    %141 = arith.addf %134, %140 : vector<8x32xf32>
    %142 = math.tanh %141 : vector<8x32xf32>
    %cst_47 = arith.constant 1.000000e+00 : f32
    %143 = vector.broadcast %cst_47 : f32 to vector<8x32xf32>
    %144 = arith.subf %143, %125 : vector<8x32xf32>
    %145 = arith.mulf %144, %3 : vector<8x32xf32>
    %146 = arith.mulf %125, %142 : vector<8x32xf32>
    %147 = arith.addf %145, %146 : vector<8x32xf32>
    %c0_48 = arith.constant 0 : index
    %c0_49 = arith.constant 0 : index
    %148 = vector.load %arg16[%c0_48, %c0_49] : memref<8x32xf32, #tpu.memory_space<vmem>>, vector<8x32xf32>
    tpu.vector_store %arg16[%c0_48, %c0_49], %147 {strides = array<i32>} : memref<8x32xf32, #tpu.memory_space<vmem>>, vector<8x32xf32>,
    %c0_50 = arith.constant 0 : index
    %c0_51 = arith.constant 0 : index
    %c0_52 = arith.constant 0 : index
    %149 = vector.load %arg14[%c0_50, %c0_51, %c0_52] : memref<1x8x32xf32, #tpu.memory_space<vmem>>, vector<1x8x32xf32>
    %150 = vector.shape_cast %149 : vector<1x8x32xf32> to vector<8x32xf32>
    %151 = vector.shape_cast %147 : vector<8x32xf32> to vector<1x8x32xf32>
    tpu.vector_store %arg14[%c0_50, %c0_51, %c0_52], %151 {strides = array<i32>} : memref<1x8x32xf32, #tpu.memory_space<vmem>>, vector<1x8x32xf32>,
    %152 = vector.extract_strided_slice %147 {offsets = [0, 0], sizes = [1, 32], strides = [1, 1]} : vector<8x32xf32> to vector<1x32xf32>
    %c0_53 = arith.constant 0 : index
    %c0_54 = arith.constant 0 : index
    %c0_55 = arith.constant 0 : index
    %c0_56 = arith.constant 0 : index
    %153 = vector.load %arg15[%c0_53, %c0_54, %c0_55, %c0_56] : memref<1x1x1x32xf32, #tpu.memory_space<vmem>>, vector<1x1x1x32xf32>
    %154 = vector.shape_cast %153 : vector<1x1x1x32xf32> to vector<1x32xf32>
    %155 = vector.shape_cast %152 : vector<1x32xf32> to vector<1x1x1x32xf32>
    tpu.vector_store %arg15[%c0_53, %c0_54, %c0_55, %c0_56], %155 {strides = array<i32>} : memref<1x1x1x32xf32, #tpu.memory_space<vmem>>, vector<1x1x1x32xf32>,
    return
  }
  func.func @transform_0(%arg0: i32, %arg1: i32) -> (i32, i32, i32) {
    %c0_i32 = arith.constant 0 : i32
    %c0_i32_0 = arith.constant 0 : i32
    %c0_i32_1 = arith.constant 0 : i32
    return %arg0, %c0_i32, %c0_i32_0 : i32, i32, i32
  }
  func.func @transform_1(%arg0: i32, %arg1: i32) -> (i32, i32, i32) {
    %c0_i32 = arith.constant 0 : i32
    %c0_i32_0 = arith.constant 0 : i32
    %c0_i32_1 = arith.constant 0 : i32
    return %arg0, %c0_i32, %c0_i32_0 : i32, i32, i32
  }
  func.func @transform_2(%arg0: i32, %arg1: i32) -> (i32, i32, i32, i32) {
    %c0_i32 = arith.constant 0 : i32
    %c0_i32_0 = arith.constant 0 : i32
    %c0_i32_1 = arith.constant 0 : i32
    %c0_i32_2 = arith.constant 0 : i32
    return %arg0, %c0_i32, %c0_i32_0, %c0_i32_1 : i32, i32, i32, i32
  }
  func.func @transform_3(%arg0: i32, %arg1: i32) -> (i32, i32) {
    %c0_i32 = arith.constant 0 : i32
    %c0_i32_0 = arith.constant 0 : i32
    %c0_i32_1 = arith.constant 0 : i32
    return %c0_i32, %c0_i32_0 : i32, i32
  }
  func.func @transform_4(%arg0: i32, %arg1: i32) -> (i32, i32) {
    %c0_i32 = arith.constant 0 : i32
    %c0_i32_0 = arith.constant 0 : i32
    %c0_i32_1 = arith.constant 0 : i32
    return %c0_i32, %c0_i32_0 : i32, i32
  }
  func.func @transform_5(%arg0: i32, %arg1: i32) -> (i32, i32) {
    %c0_i32 = arith.constant 0 : i32
    %c0_i32_0 = arith.constant 0 : i32
    %c0_i32_1 = arith.constant 0 : i32
    return %c0_i32, %c0_i32_0 : i32, i32
  }
  func.func @transform_6(%arg0: i32, %arg1: i32) -> (i32, i32, i32) {
    %c0_i32 = arith.constant 0 : i32
    %c0_i32_0 = arith.constant 0 : i32
    %c0_i32_1 = arith.constant 0 : i32
    %c0_i32_2 = arith.constant 0 : i32
    return %c0_i32, %c0_i32_0, %c0_i32_1 : i32, i32, i32
  }
  func.func @transform_7(%arg0: i32, %arg1: i32) -> (i32, i32, i32) {
    %c0_i32 = arith.constant 0 : i32
    %c0_i32_0 = arith.constant 0 : i32
    %c0_i32_1 = arith.constant 0 : i32
    %c0_i32_2 = arith.constant 0 : i32
    return %c0_i32, %c0_i32_0, %c0_i32_1 : i32, i32, i32
  }
  func.func @transform_8(%arg0: i32, %arg1: i32) -> (i32, i32, i32) {
    %c0_i32 = arith.constant 0 : i32
    %c0_i32_0 = arith.constant 0 : i32
    %c0_i32_1 = arith.constant 0 : i32
    %c0_i32_2 = arith.constant 0 : i32
    return %c0_i32, %c0_i32_0, %c0_i32_1 : i32, i32, i32
  }
  func.func @transform_9(%arg0: i32, %arg1: i32) -> (i32, i32, i32) {
    %c0_i32 = arith.constant 0 : i32
    %c0_i32_0 = arith.constant 0 : i32
    %c0_i32_1 = arith.constant 0 : i32
    %c0_i32_2 = arith.constant 0 : i32
    return %c0_i32, %c0_i32_0, %c0_i32_1 : i32, i32, i32
  }
  func.func @transform_10(%arg0: i32, %arg1: i32) -> (i32, i32, i32) {
    %c0_i32 = arith.constant 0 : i32
    %c0_i32_0 = arith.constant 0 : i32
    %c0_i32_1 = arith.constant 0 : i32
    %c0_i32_2 = arith.constant 0 : i32
    return %c0_i32, %c0_i32_0, %c0_i32_1 : i32, i32, i32
  }
  func.func @transform_11(%arg0: i32, %arg1: i32) -> (i32, i32, i32) {
    %c0_i32 = arith.constant 0 : i32
    %c0_i32_0 = arith.constant 0 : i32
    %c0_i32_1 = arith.constant 0 : i32
    %c0_i32_2 = arith.constant 0 : i32
    return %c0_i32, %c0_i32_0, %c0_i32_1 : i32, i32, i32
  }
  func.func @transform_12(%arg0: i32, %arg1: i32) -> (i32, i32, i32) {
    %c0_i32 = arith.constant 0 : i32
    %c0_i32_0 = arith.constant 0 : i32
    %c0_i32_1 = arith.constant 0 : i32
    return %arg0, %c0_i32, %c0_i32_0 : i32, i32, i32
  }
  func.func @transform_13(%arg0: i32, %arg1: i32) -> (i32, i32, i32, i32) {
    %c0_i32 = arith.constant 0 : i32
    %c0_i32_0 = arith.constant 0 : i32
    %c0_i32_1 = arith.constant 0 : i32
    return %arg1, %arg0, %c0_i32, %c0_i32_0 : i32, i32, i32, i32
  }
}

</mosaic_0001>

<llo_original>
// kernel: tpu_custom_call.1
$region0: #{tpu_custom_call.1}
  #allocation0 [shape = 'u32[]', space=smem, size = 0x4, offset = 0x4, fixed_abs, tag = 'smem constant byte address 0x4 - core index']
  #allocation1 [shape = 'u32[144,128]{1,0:T(1,128)}', space=vmem, size = 0x12000, scoped, tag = 'internal scratch']
  #allocation2 [shape = 'f32[8,32]{1,0:T(8,128)}', space=vmem, size = 0x1000, scoped, tag = 'scratch operand']
  %s0 = inlined_call_operand.hbm [shape: f32[2,8,32], index: 0, kind: input, shape index: {}]
  %s1 = inlined_call_operand.hbm [shape: f32[2,8,16], index: 1, kind: input, shape index: {}]
  %s2 = inlined_call_operand.hbm [shape: bf16[2,2,8,8], index: 2, kind: input, shape index: {}]
  %s3 = inlined_call_operand.hbm [shape: bf16[32,32], index: 3, kind: input, shape index: {}]
  %s4 = inlined_call_operand.hbm [shape: bf16[16,32], index: 4, kind: input, shape index: {}]
  %s5 = inlined_call_operand.vmem [shape: f32[1,32], index: 5, kind: input, shape index: {}]
  %s6 = inlined_call_operand.hbm [shape: bf16[2,32,64], index: 6, kind: input, shape index: {}]
  %s7 = inlined_call_operand.vmem [shape: f32[2,1,64], index: 7, kind: input, shape index: {}]
  %s8 = inlined_call_operand.hbm [shape: f32[2,4,32], index: 8, kind: input, shape index: {}]
  %s9 = inlined_call_operand.hbm [shape: bf16[2,64,96], index: 9, kind: input, shape index: {}]
  %s10 = inlined_call_operand.vmem [shape: bf16[2,32,64], index: 10, kind: input, shape index: {}]
  %s11 = inlined_call_operand.hbm [shape: bf16[2,32,32], index: 11, kind: input, shape index: {}]
  %s12 = inlined_call_operand.hbm [shape: f32[2,8,32], index: 12, kind: output, shape index: {0}]
  %s13 = inlined_call_operand.hbm [shape: f32[2,2,1,32], index: 13, kind: output, shape index: {1}]
  %14 = xla_tuple %s12, %s13
  %s15 = sld [smem:[#allocation0]]
  $region129: #{tpu_custom_call.1} parent=0
    _
  %s17 = ssub.s32 1, %s15
  %s18 = scalar_select 0, %s17, %s15
  $region1: #{tpu_custom_call.1} parent=0
    #allocation3 [shape = 'u8[8192]{0}', space=vmem, size = 0x2000, scoped, tag = 'input window, operand 0']
    #allocation4 [shape = 's32[2]{0}', space=sflag, size = 0x8, scoped, tag = 'scoped memory for tpu_custom_call.1']
    #allocation5 [shape = 's32[2]{0}', space=sflag, size = 0x8, scoped, tag = 'scoped memory for tpu_custom_call.1']
    #allocation6 [shape = 'u8[8192]{0}', space=vmem, size = 0x2000, scoped, tag = 'input window, operand 1']
    #allocation7 [shape = 's32[2]{0}', space=sflag, size = 0x8, scoped, tag = 'scoped memory for tpu_custom_call.1']
    #allocation8 [shape = 'u8[8192]{0}', space=vmem, size = 0x2000, scoped, tag = 'input window, operand 2']
    #allocation9 [shape = 'u8[8192]{0}', space=vmem, size = 0x2000, scoped, tag = 'input window, operand 3, single buffered']
    #allocation10 [shape = 's32[1]{0}', space=sflag, size = 0x4, scoped, tag = 'scoped memory for tpu_custom_call.1']
    #allocation11 [shape = 'u8[4096]{0}', space=vmem, size = 0x1000, scoped, tag = 'input window, operand 4, single buffered']
    #allocation12 [shape = 'u8[16384]{0}', space=vmem, size = 0x4000, scoped, tag = 'input window, operand 6, single buffered']
    #allocation13 [shape = 's32[1]{0}', space=sflag, size = 0x4, scoped, tag = 'scoped memory for tpu_custom_call.1']
    #allocation14 [shape = 'u8[4096]{0}', space=vmem, size = 0x1000, scoped, tag = 'input window, operand 8, single buffered']
    #allocation15 [shape = 'u8[32768]{0}', space=vmem, size = 0x8000, scoped, tag = 'input window, operand 9, single buffered']
    #allocation16 [shape = 's32[1]{0}', space=sflag, size = 0x4, scoped, tag = 'scoped memory for tpu_custom_call.1']
    #allocation17 [shape = 'u8[16384]{0}', space=vmem, size = 0x4000, scoped, tag = 'input window, operand 11, single buffered']
    #allocation18 [shape = 'u8[8192]{0}', space=vmem, size = 0x2000, scoped, tag = 'output window, operand 0']
    #allocation19 [shape = 'u8[1024]{0}', space=vmem, size = 0x400, scoped, tag = 'output window, operand 1']
    #allocation20 [shape = 's32[2]{0}', space=sflag, size = 0x8, scoped, tag = 'scoped memory for tpu_custom_call.1']
    %19 = vsyncpa [#allocation4], 0
    %s20 = scalar_lea.sflag [#allocation4], 1
    %21 = vsyncpa %s20, 0
    %22 = vsyncpa [#allocation7], 0
    %s23 = scalar_lea.sflag [#allocation7], 1
    %24 = vsyncpa %s23, 0
    %25 = vsyncpa [#allocation10], 0
    %26 = vsyncpa [#allocation13], 0
    %27 = vsyncpa [#allocation16], 0
    %28 = vsyncpa [#allocation5], 0
    %s29 = scalar_lea.sflag [#allocation5], 1
    %30 = vsyncpa %s29, 0
    %31 = vsyncpa [#allocation20], 0
    %s32 = scalar_lea.sflag [#allocation20], 1
    %33 = vsyncpa %s32, 0
    loop: start=0, step=1, limit=6
    $region2: #{tpu_custom_call.1} parent=1 // loop_pre_header
      _
    $region3: #{tpu_custom_call.1} parent=1 // loop_header
      %s35 = sphi 0, %s39
      %p36 = scmp.ge.s32.totalorder %s35, 6
      %s42 = sphi 0, %s54
      %s43 = sphi 0, %s50
      %s44 = sphi 0, %s42
      %s45 = sphi 0, %s43
      %s46 = sphi 0, %s44
      %s47 = sphi 0, %s45
      %s57 = sphi 0, %s59
      %s60 = sphi 0, %s57
      %s61 = sphi 0, %s60
      %s77 = sphi 0, %s61
      %s83 = sphi 0, %s85
      %s86 = sphi 0, %s83
      %s87 = sphi 0, %s86
      %s103 = sphi 0, %s87
      %s109 = sphi 0, %s111
      %s112 = sphi 0, %s109
      %s113 = sphi 0, %s112
      %s129 = sphi 0, %s113
      %s133 = sphi 0, %s133
      %s135 = sphi 0, %s133
      %s136 = sphi 0, %s135
      %s150 = sphi 0, %s136
      %s154 = sphi 0, %s154
      %s156 = sphi 0, %s154
      %s157 = sphi 0, %s156
      %s171 = sphi 0, %s157
      %s175 = sphi 0, %s175
      %s177 = sphi 0, %s175
      %s178 = sphi 0, %s177
      %s192 = sphi 0, %s178
      %s196 = sphi 0, %s196
      %s198 = sphi 0, %s196
      %s199 = sphi 0, %s198
      %s213 = sphi 0, %s199
      %s217 = sphi 0, %s217
      %s219 = sphi 0, %s217
      %s220 = sphi 0, %s219
      %s234 = sphi 0, %s220
      %s238 = sphi 0, %s238
      %s240 = sphi 0, %s238
      %s241 = sphi 0, %s240
      %s255 = sphi 0, %s241
      %s259 = sphi 0, %s259
      %s261 = sphi 0, %s259
      %s262 = sphi 0, %s261
      %s276 = sphi 0, %s262
      %s280 = sphi 0, %s280
      %s282 = sphi 0, %s280
      %s283 = sphi 0, %s282
      %s297 = sphi 0, %s283
      %s301 = sphi 0, %s301
      %s303 = sphi 0, %s301
      %s304 = sphi 0, %s303
      %s318 = sphi 0, %s304
      %s324 = sphi 0, %s326
      %s327 = sphi 0, %s324
      %s328 = sphi 0, %s327
      %s344 = sphi 0, %s328
      %s352 = sphi 0, %s354
      %s355 = sphi 0, %s352
      %s356 = sphi 0, %s355
      %s372 = sphi 0, %s356
    $region4: #{tpu_custom_call.1} parent=1 // loop_header_branch
      %38 = sbr.rel (%p36) target = $region8
    $region5: #{tpu_custom_call.1} parent=1 // loop_body
      %s40 = ssub.s32 %s35, 1
      %s41 = ssub.s32 %s35, 2
      %s48 = sadd.s32 1, %s43
      %p49 = scmp.ge.s32.totalorder %s48, 2
      %s50 = scalar_select %p49, 0, %s48
      %s51 = sadd.s32 1, %s42
      %s52 = scalar_select %p49, %s51, %s42
      %p53 = scmp.ge.s32.totalorder %s52, 2
      %s54 = scalar_select %p53, 0, %s52
      %s55 = ssub.s32 %s42, %s54
      %p56 = scmp.eq.s32.totalorder %s55, 0
      %s58 = sadd.s32 %s57, 1
      %s59 = scalar_select %p56, %s57, %s58
      %p62 = pneg %p56
      %p63 = scmp.eq.s32.totalorder %s35, 3
      %p64 = por %p62, %p63
      %p65 = scmp.ne.s32.totalorder %s57, %s60
      %p66 = scmp.eq.s32.totalorder %s35, 0
      %p67 = por %p65, %p66
      %p68 = scmp.ne.s32.totalorder %s57, %s60
      %p69 = scmp.eq.s32.totalorder %s40, 3
      %p70 = por %p68, %p69
      %p71 = scmp.ne.s32.totalorder %s60, %s61
      %p72 = scmp.eq.s32.totalorder %s40, 0
      %p73 = por %p71, %p72
      %p74 = scmp.ne.s32.totalorder %s60, %s61
      %p75 = scmp.eq.s32.totalorder %s41, 3
      %p76 = por %p74, %p75
      %p78 = scmp.ne.s32.totalorder %s61, %s77
      %p79 = scmp.eq.s32.totalorder %s41, 0
      %p80 = por %p78, %p79
      %s81 = ssub.s32 %s42, %s54
      %p82 = scmp.eq.s32.totalorder %s81, 0
      %s84 = sadd.s32 %s83, 1
      %s85 = scalar_select %p82, %s83, %s84
      %p88 = pneg %p82
      %p89 = scmp.eq.s32.totalorder %s35, 3
      %p90 = por %p88, %p89
      %p91 = scmp.ne.s32.totalorder %s83, %s86
      %p92 = scmp.eq.s32.totalorder %s35, 0
      %p93 = por %p91, %p92
      %p94 = scmp.ne.s32.totalorder %s83, %s86
      %p95 = scmp.eq.s32.totalorder %s40, 3
      %p96 = por %p94, %p95
      %p97 = scmp.ne.s32.totalorder %s86, %s87
      %p98 = scmp.eq.s32.totalorder %s40, 0
      %p99 = por %p97, %p98
      %p100 = scmp.ne.s32.totalorder %s86, %s87
      %p101 = scmp.eq.s32.totalorder %s41, 3
      %p102 = por %p100, %p101
      %p104 = scmp.ne.s32.totalorder %s87, %s103
      %p105 = scmp.eq.s32.totalorder %s41, 0
      %p106 = por %p104, %p105
      %s107 = ssub.s32 %s42, %s54
      %p108 = scmp.eq.s32.totalorder %s107, 0
      %s110 = sadd.s32 %s109, 1
      %s111 = scalar_select %p108, %s109, %s110
      %p114 = pneg %p108
      %p115 = scmp.eq.s32.totalorder %s35, 3
      %p116 = por %p114, %p115
      %p117 = scmp.ne.s32.totalorder %s109, %s112
      %p118 = scmp.eq.s32.totalorder %s35, 0
      %p119 = por %p117, %p118
      %p120 = scmp.ne.s32.totalorder %s109, %s112
      %p121 = scmp.eq.s32.totalorder %s40, 3
      %p122 = por %p120, %p121
      %p123 = scmp.ne.s32.totalorder %s112, %s113
      %p124 = scmp.eq.s32.totalorder %s40, 0
      %p125 = por %p123, %p124
      %p126 = scmp.ne.s32.totalorder %s112, %s113
      %p127 = scmp.eq.s32.totalorder %s41, 3
      %p128 = por %p126, %p127
      %p130 = scmp.ne.s32.totalorder %s113, %s129
      %p131 = scmp.eq.s32.totalorder %s41, 0
      %p132 = por %p130, %p131
      %s134 = sadd.s32 %s133, 1
      %p137 = scmp.eq.s32.totalorder %s35, 3
      %p138 = scmp.ne.s32.totalorder %s133, %s135
      %p139 = scmp.eq.s32.totalorder %s35, 0
      %p140 = por %p138, %p139
      %p141 = scmp.ne.s32.totalorder %s133, %s135
      %p142 = scmp.eq.s32.totalorder %s40, 3
      %p143 = por %p141, %p142
      %p144 = scmp.ne.s32.totalorder %s135, %s136
      %p145 = scmp.eq.s32.totalorder %s40, 0
      %p146 = por %p144, %p145
      %p147 = scmp.ne.s32.totalorder %s135, %s136
      %p148 = scmp.eq.s32.totalorder %s41, 3
      %p149 = por %p147, %p148
      %p151 = scmp.ne.s32.totalorder %s136, %s150
      %p152 = scmp.eq.s32.totalorder %s41, 0
      %p153 = por %p151, %p152
      %s155 = sadd.s32 %s154, 1
      %p158 = scmp.eq.s32.totalorder %s35, 3
      %p159 = scmp.ne.s32.totalorder %s154, %s156
      %p160 = scmp.eq.s32.totalorder %s35, 0
      %p161 = por %p159, %p160
      %p162 = scmp.ne.s32.totalorder %s154, %s156
      %p163 = scmp.eq.s32.totalorder %s40, 3
      %p164 = por %p162, %p163
      %p165 = scmp.ne.s32.totalorder %s156, %s157
      %p166 = scmp.eq.s32.totalorder %s40, 0
      %p167 = por %p165, %p166
      %p168 = scmp.ne.s32.totalorder %s156, %s157
      %p169 = scmp.eq.s32.totalorder %s41, 3
      %p170 = por %p168, %p169
      %p172 = scmp.ne.s32.totalorder %s157, %s171
      %p173 = scmp.eq.s32.totalorder %s41, 0
      %p174 = por %p172, %p173
      %s176 = sadd.s32 %s175, 1
      %p179 = scmp.eq.s32.totalorder %s35, 3
      %p180 = scmp.ne.s32.totalorder %s175, %s177
      %p181 = scmp.eq.s32.totalorder %s35, 0
      %p182 = por %p180, %p181
      %p183 = scmp.ne.s32.totalorder %s175, %s177
      %p184 = scmp.eq.s32.totalorder %s40, 3
      %p185 = por %p183, %p184
      %p186 = scmp.ne.s32.totalorder %s177, %s178
      %p187 = scmp.eq.s32.totalorder %s40, 0
      %p188 = por %p186, %p187
      %p189 = scmp.ne.s32.totalorder %s177, %s178
      %p190 = scmp.eq.s32.totalorder %s41, 3
      %p191 = por %p189, %p190
      %p193 = scmp.ne.s32.totalorder %s178, %s192
      %p194 = scmp.eq.s32.totalorder %s41, 0
      %p195 = por %p193, %p194
      %s197 = sadd.s32 %s196, 1
      %p200 = scmp.eq.s32.totalorder %s35, 3
      %p201 = scmp.ne.s32.totalorder %s196, %s198
      %p202 = scmp.eq.s32.totalorder %s35, 0
      %p203 = por %p201, %p202
      %p204 = scmp.ne.s32.totalorder %s196, %s198
      %p205 = scmp.eq.s32.totalorder %s40, 3
      %p206 = por %p204, %p205
      %p207 = scmp.ne.s32.totalorder %s198, %s199
      %p208 = scmp.eq.s32.totalorder %s40, 0
      %p209 = por %p207, %p208
      %p210 = scmp.ne.s32.totalorder %s198, %s199
      %p211 = scmp.eq.s32.totalorder %s41, 3
      %p212 = por %p210, %p211
      %p214 = scmp.ne.s32.totalorder %s199, %s213
      %p215 = scmp.eq.s32.totalorder %s41, 0
      %p216 = por %p214, %p215
      %s218 = sadd.s32 %s217, 1
      %p221 = scmp.eq.s32.totalorder %s35, 3
      %p222 = scmp.ne.s32.totalorder %s217, %s219
      %p223 = scmp.eq.s32.totalorder %s35, 0
      %p224 = por %p222, %p223
      %p225 = scmp.ne.s32.totalorder %s217, %s219
      %p226 = scmp.eq.s32.totalorder %s40, 3
      %p227 = por %p225, %p226
      %p228 = scmp.ne.s32.totalorder %s219, %s220
      %p229 = scmp.eq.s32.totalorder %s40, 0
      %p230 = por %p228, %p229
      %p231 = scmp.ne.s32.totalorder %s219, %s220
      %p232 = scmp.eq.s32.totalorder %s41, 3
      %p233 = por %p231, %p232
      %p235 = scmp.ne.s32.totalorder %s220, %s234
      %p236 = scmp.eq.s32.totalorder %s41, 0
      %p237 = por %p235, %p236
      %s239 = sadd.s32 %s238, 1
      %p242 = scmp.eq.s32.totalorder %s35, 3
      %p243 = scmp.ne.s32.totalorder %s238, %s240
      %p244 = scmp.eq.s32.totalorder %s35, 0
      %p245 = por %p243, %p244
      %p246 = scmp.ne.s32.totalorder %s238, %s240
      %p247 = scmp.eq.s32.totalorder %s40, 3
      %p248 = por %p246, %p247
      %p249 = scmp.ne.s32.totalorder %s240, %s241
      %p250 = scmp.eq.s32.totalorder %s40, 0
      %p251 = por %p249, %p250
      %p252 = scmp.ne.s32.totalorder %s240, %s241
      %p253 = scmp.eq.s32.totalorder %s41, 3
      %p254 = por %p252, %p253
      %p256 = scmp.ne.s32.totalorder %s241, %s255
      %p257 = scmp.eq.s32.totalorder %s41, 0
      %p258 = por %p256, %p257
      %s260 = sadd.s32 %s259, 1
      %p263 = scmp.eq.s32.totalorder %s35, 3
      %p264 = scmp.ne.s32.totalorder %s259, %s261
      %p265 = scmp.eq.s32.totalorder %s35, 0
      %p266 = por %p264, %p265
      %p267 = scmp.ne.s32.totalorder %s259, %s261
      %p268 = scmp.eq.s32.totalorder %s40, 3
      %p269 = por %p267, %p268
      %p270 = scmp.ne.s32.totalorder %s261, %s262
      %p271 = scmp.eq.s32.totalorder %s40, 0
      %p272 = por %p270, %p271
      %p273 = scmp.ne.s32.totalorder %s261, %s262
      %p274 = scmp.eq.s32.totalorder %s41, 3
      %p275 = por %p273, %p274
      %p277 = scmp.ne.s32.totalorder %s262, %s276
      %p278 = scmp.eq.s32.totalorder %s41, 0
      %p279 = por %p277, %p278
      %s281 = sadd.s32 %s280, 1
      %p284 = scmp.eq.s32.totalorder %s35, 3
      %p285 = scmp.ne.s32.totalorder %s280, %s282
      %p286 = scmp.eq.s32.totalorder %s35, 0
      %p287 = por %p285, %p286
      %p288 = scmp.ne.s32.totalorder %s280, %s282
      %p289 = scmp.eq.s32.totalorder %s40, 3
      %p290 = por %p288, %p289
      %p291 = scmp.ne.s32.totalorder %s282, %s283
      %p292 = scmp.eq.s32.totalorder %s40, 0
      %p293 = por %p291, %p292
      %p294 = scmp.ne.s32.totalorder %s282, %s283
      %p295 = scmp.eq.s32.totalorder %s41, 3
      %p296 = por %p294, %p295
      %p298 = scmp.ne.s32.totalorder %s283, %s297
      %p299 = scmp.eq.s32.totalorder %s41, 0
      %p300 = por %p298, %p299
      %s302 = sadd.s32 %s301, 1
      %p305 = scmp.eq.s32.totalorder %s35, 3
      %p306 = scmp.ne.s32.totalorder %s301, %s303
      %p307 = scmp.eq.s32.totalorder %s35, 0
      %p308 = por %p306, %p307
      %p309 = scmp.ne.s32.totalorder %s301, %s303
      %p310 = scmp.eq.s32.totalorder %s40, 3
      %p311 = por %p309, %p310
      %p312 = scmp.ne.s32.totalorder %s303, %s304
      %p313 = scmp.eq.s32.totalorder %s40, 0
      %p314 = por %p312, %p313
      %p315 = scmp.ne.s32.totalorder %s303, %s304
      %p316 = scmp.eq.s32.totalorder %s41, 3
      %p317 = por %p315, %p316
      %p319 = scmp.ne.s32.totalorder %s304, %s318
      %p320 = scmp.eq.s32.totalorder %s41, 0
      %p321 = por %p319, %p320
      %s322 = ssub.s32 %s42, %s54
      %p323 = scmp.eq.s32.totalorder %s322, 0
      %s325 = sadd.s32 %s324, 1
      %s326 = scalar_select %p323, %s324, %s325
      %p329 = pneg %p323
      %p330 = scmp.eq.s32.totalorder %s35, 3
      %p331 = por %p329, %p330
      %p332 = scmp.ne.s32.totalorder %s324, %s327
      %p333 = scmp.eq.s32.totalorder %s35, 0
      %p334 = por %p332, %p333
      %p335 = scmp.ne.s32.totalorder %s324, %s327
      %p336 = scmp.eq.s32.totalorder %s40, 3
      %p337 = por %p335, %p336
      %p338 = scmp.ne.s32.totalorder %s327, %s328
      %p339 = scmp.eq.s32.totalorder %s40, 0
      %p340 = por %p338, %p339
      %p341 = scmp.ne.s32.totalorder %s327, %s328
      %p342 = scmp.eq.s32.totalorder %s41, 3
      %p343 = por %p341, %p342
      %p345 = scmp.ne.s32.totalorder %s328, %s344
      %p346 = scmp.eq.s32.totalorder %s41, 0
      %p347 = por %p345, %p346
      %s348 = ssub.s32 %s43, %s50
      %s349 = ssub.s32 %s42, %s54
      %s350 = sor.u32 %s348, %s349
      %p351 = scmp.eq.s32.totalorder %s350, 0
      %s353 = sadd.s32 %s352, 1
      %s354 = scalar_select %p351, %s352, %s353
      %p357 = pneg %p351
      %p358 = scmp.eq.s32.totalorder %s35, 3
      %p359 = por %p357, %p358
      %p360 = scmp.ne.s32.totalorder %s352, %s355
      %p361 = scmp.eq.s32.totalorder %s35, 0
      %p362 = por %p360, %p361
      %p363 = scmp.ne.s32.totalorder %s352, %s355
      %p364 = scmp.eq.s32.totalorder %s40, 3
      %p365 = por %p363, %p364
      %p366 = scmp.ne.s32.totalorder %s355, %s356
      %p367 = scmp.eq.s32.totalorder %s40, 0
      %p368 = por %p366, %p367
      %p369 = scmp.ne.s32.totalorder %s355, %s356
      %p370 = scmp.eq.s32.totalorder %s41, 3
      %p371 = por %p369, %p370
      %p373 = scmp.ne.s32.totalorder %s356, %s372
      %p374 = scmp.eq.s32.totalorder %s41, 0
      %p375 = por %p373, %p374
      %p376 = scmp.le.s32.totalorder 1, %s35
      %p377 = scmp.lt.s32.totalorder %s35, 5
      %p378 = pnand %p376, %p377
      %p379 = pneg %p378
      // Predicated region
      $region9: #{tpu_custom_call.1} parent=5 // pred_check
        _
      $region10: #{tpu_custom_call.1} parent=5 // pred_check_branch
        %381 = sbr.rel (%p378) target = $region12
      $region11: #{tpu_custom_call.1} parent=5 // pred_region
        %s382 = ssub.s32 %s35, 1
        // Predicated region
        $region13: #{tpu_custom_call.1} parent=11 // pred_check
          %p383 = pneg %p146
        $region14: #{tpu_custom_call.1} parent=11 // pred_check_branch
          %385 = sbr.rel (%p383) target = $region16
        $region15: #{tpu_custom_call.1} parent=11 // pred_region
          %s387 = ssub.s32 256, 256
          %388 = vsyncadd [#allocation10], %s387
          %s389 = sshll.u32 [#allocation9], 4
          %s390 = int_to_ptr.vmem [resolvable:$true] %s389
          %395 = dma.hbm_to_vmem [thread:$0]  %s3, 256, %s390, [#allocation10], 64, 64, 4
        $region16: #{tpu_custom_call.1} parent=11 // pred_fallthru
          _
        // Predicated region
        $region17: #{tpu_custom_call.1} parent=11 // pred_check
          %p396 = pneg %p167
        $region18: #{tpu_custom_call.1} parent=11 // pred_check_branch
          %398 = sbr.rel (%p396) target = $region20
        $region19: #{tpu_custom_call.1} parent=11 // pred_region
          %s400 = ssub.s32 128, 128
          %401 = vsyncadd [#allocation10], %s400
          %s402 = sshll.u32 [#allocation11], 4
          %s403 = int_to_ptr.vmem [resolvable:$true] %s402
          %408 = dma.hbm_to_vmem [thread:$0]  %s4, 128, %s403, [#allocation10], 64, 64, 4
        $region20: #{tpu_custom_call.1} parent=11 // pred_fallthru
          _
        // Predicated region
        $region21: #{tpu_custom_call.1} parent=11 // pred_check
          %p409 = pneg %p188
        $region22: #{tpu_custom_call.1} parent=11 // pred_check_branch
          %411 = sbr.rel (%p409) target = $region24
        $region23: #{tpu_custom_call.1} parent=11 // pred_region
          _
        $region24: #{tpu_custom_call.1} parent=11 // pred_fallthru
          _
        // Predicated region
        $region25: #{tpu_custom_call.1} parent=11 // pred_check
          %p412 = pneg %p209
        $region26: #{tpu_custom_call.1} parent=11 // pred_check_branch
          %414 = sbr.rel (%p412) target = $region28
        $region27: #{tpu_custom_call.1} parent=11 // pred_region
          %s416 = ssub.s32 512, 512
          %417 = vsyncadd [#allocation13], %s416
          %s418 = sshll.u32 [#allocation12], 4
          %s419 = int_to_ptr.vmem [resolvable:$true] %s418
          %424 = dma.hbm_to_vmem [thread:$0]  %s6, 512, %s419, [#allocation13], 64, 64, 4
        $region28: #{tpu_custom_call.1} parent=11 // pred_fallthru
          _
        // Predicated region
        $region29: #{tpu_custom_call.1} parent=11 // pred_check
          %p425 = pneg %p230
        $region30: #{tpu_custom_call.1} parent=11 // pred_check_branch
          %427 = sbr.rel (%p425) target = $region32
        $region31: #{tpu_custom_call.1} parent=11 // pred_region
          _
        $region32: #{tpu_custom_call.1} parent=11 // pred_fallthru
          _
        // Predicated region
        $region33: #{tpu_custom_call.1} parent=11 // pred_check
          %p428 = pneg %p251
        $region34: #{tpu_custom_call.1} parent=11 // pred_check_branch
          %430 = sbr.rel (%p428) target = $region36
        $region35: #{tpu_custom_call.1} parent=11 // pred_region
          %s432 = ssub.s32 128, 128
          %433 = vsyncadd [#allocation13], %s432
          %s434 = sshll.u32 [#allocation14], 4
          %s435 = int_to_ptr.vmem [resolvable:$true] %s434
          %440 = dma.hbm_to_vmem [thread:$0]  %s8, 128, %s435, [#allocation13], 64, 64, 4
        $region36: #{tpu_custom_call.1} parent=11 // pred_fallthru
          _
        // Predicated region
        $region37: #{tpu_custom_call.1} parent=11 // pred_check
          %p441 = pneg %p272
        $region38: #{tpu_custom_call.1} parent=11 // pred_check_branch
          %443 = sbr.rel (%p441) target = $region40
        $region39: #{tpu_custom_call.1} parent=11 // pred_region
          %s445 = ssub.s32 1024, 1024
          %446 = vsyncadd [#allocation16], %s445
          %s447 = sshll.u32 [#allocation15], 4
          %s448 = int_to_ptr.vmem [resolvable:$true] %s447
          %453 = dma.hbm_to_vmem [thread:$0]  %s9, 1024, %s448, [#allocation16], 64, 64, 4
        $region40: #{tpu_custom_call.1} parent=11 // pred_fallthru
          _
        // Predicated region
        $region41: #{tpu_custom_call.1} parent=11 // pred_check
          %p454 = pneg %p293
        $region42: #{tpu_custom_call.1} parent=11 // pred_check_branch
          %456 = sbr.rel (%p454) target = $region44
        $region43: #{tpu_custom_call.1} parent=11 // pred_region
          _
        $region44: #{tpu_custom_call.1} parent=11 // pred_fallthru
          _
        // Predicated region
        $region45: #{tpu_custom_call.1} parent=11 // pred_check
          %p457 = pneg %p314
        $region46: #{tpu_custom_call.1} parent=11 // pred_check_branch
          %459 = sbr.rel (%p457) target = $region48
        $region47: #{tpu_custom_call.1} parent=11 // pred_region
          %s461 = ssub.s32 512, 512
          %462 = vsyncadd [#allocation16], %s461
          %s463 = sshll.u32 [#allocation17], 4
          %s464 = int_to_ptr.vmem [resolvable:$true] %s463
          %469 = dma.hbm_to_vmem [thread:$0]  %s11, 512, %s464, [#allocation16], 64, 64, 4
        $region48: #{tpu_custom_call.1} parent=11 // pred_fallthru
          _
      $region12: #{tpu_custom_call.1} parent=5 // pred_fallthru
        _
      %p470 = scmp.lt.s32.totalorder %s35, 4
      // Predicated region
      $region49: #{tpu_custom_call.1} parent=5 // pred_check
        %p471 = pneg %p470
      $region50: #{tpu_custom_call.1} parent=5 // pred_check_branch
        %473 = sbr.rel (%p471) target = $region52
      $region51: #{tpu_custom_call.1} parent=5 // pred_region
        // Predicated region
        $region53: #{tpu_custom_call.1} parent=51 // pred_check
          %p474 = pneg %p67
        $region54: #{tpu_custom_call.1} parent=51 // pred_check_branch
          %476 = sbr.rel (%p474) target = $region56
        $region55: #{tpu_custom_call.1} parent=51 // pred_region
          %s477 = sand.u32 %s57, 1
          %s478 = scalar_lea.sflag [#allocation4], %s477
          %s479 = sand.u32 %s57, 1
          %s480 = smul.addr %s479, 8
          %s481 = scalar_lea.vmem [#allocation3], %s480
          %s483 = ssub.s32 128, 128
          %484 = vsyncadd %s478, %s483
          %s485 = smul.addr %s42, 128
          %s486 = scalar_lea.hbm %s0, %s485
          %s488 = sshll.u32 %s481, 4
          %s489 = int_to_ptr.vmem [resolvable:$true] %s488
          %491 = dma.hbm_to_vmem [thread:$0]  %s486, 128, %s489, %s478
        $region56: #{tpu_custom_call.1} parent=51 // pred_fallthru
          _
        // Predicated region
        $region57: #{tpu_custom_call.1} parent=51 // pred_check
          %p492 = pneg %p93
        $region58: #{tpu_custom_call.1} parent=51 // pred_check_branch
          %494 = sbr.rel (%p492) target = $region60
        $region59: #{tpu_custom_call.1} parent=51 // pred_region
          %s495 = sand.u32 %s35, 1
          %s496 = scalar_lea.sflag [#allocation7], %s495
          %s497 = sand.u32 %s83, 1
          %s498 = smul.addr %s497, 8
          %s499 = scalar_lea.vmem [#allocation6], %s498
          %s501 = ssub.s32 128, 128
          %502 = vsyncadd %s496, %s501
          %s503 = smul.addr %s42, 128
          %s504 = scalar_lea.hbm %s1, %s503
          %s506 = sshll.u32 %s499, 4
          %s507 = int_to_ptr.vmem [resolvable:$true] %s506
          %509 = dma.hbm_to_vmem [thread:$0]  %s504, 128, %s507, %s496
        $region60: #{tpu_custom_call.1} parent=51 // pred_fallthru
          _
        // Predicated region
        $region61: #{tpu_custom_call.1} parent=51 // pred_check
          %p510 = pneg %p119
        $region62: #{tpu_custom_call.1} parent=51 // pred_check_branch
          %512 = sbr.rel (%p510) target = $region64
        $region63: #{tpu_custom_call.1} parent=51 // pred_region
          %s513 = sand.u32 %s35, 1
          %s514 = scalar_lea.sflag [#allocation7], %s513
          %s515 = sand.u32 %s109, 1
          %s516 = smul.addr %s515, 8
          %s517 = scalar_lea.vmem [#allocation8], %s516
          %s519 = ssub.s32 128, 128
          %520 = vsyncadd %s514, %s519
          %s521 = smul.addr %s42, 2
          %s522 = smul.addr %s521, 64
          %s523 = scalar_lea.hbm %s2, %s522
          %s524 = sshll.u32 %s517, 4
          %s525 = int_to_ptr.vmem [resolvable:$true] %s524
          %530 = dma.hbm_to_vmem [thread:$0]  %s523, 128, %s525, %s514, 64, 64, 4
        $region64: #{tpu_custom_call.1} parent=51 // pred_fallthru
          _
      $region52: #{tpu_custom_call.1} parent=5 // pred_fallthru
        _
      %p531 = scmp.le.s32.totalorder 1, %s35
      %p532 = scmp.lt.s32.totalorder %s35, 5
      %p533 = pnand %p531, %p532
      %p534 = pneg %p533
      // Predicated region
      $region65: #{tpu_custom_call.1} parent=5 // pred_check
        _
      $region66: #{tpu_custom_call.1} parent=5 // pred_check_branch
        %536 = sbr.rel (%p533) target = $region68
      $region67: #{tpu_custom_call.1} parent=5 // pred_region
        %s537 = ssub.s32 %s35, 1
        %s538 = sand.u32 %s60, 1
        %s539 = scalar_lea.sflag [#allocation4], %s538
        %s540 = sand.u32 %s60, 1
        %s541 = smul.addr %s540, 8
        %s542 = scalar_lea.vmem [#allocation3], %s541
        // Predicated region
        $region69: #{tpu_custom_call.1} parent=67 // pred_check
          %p543 = pneg %p73
        $region70: #{tpu_custom_call.1} parent=67 // pred_check_branch
          %545 = sbr.rel (%p543) target = $region72
        $region71: #{tpu_custom_call.1} parent=67 // pred_region
          %546 = dma.done %s539, 128
        $region72: #{tpu_custom_call.1} parent=67 // pred_fallthru
          _
        %s547 = sand.u32 %s40, 1
        %s548 = scalar_lea.sflag [#allocation7], %s547
        %s549 = sand.u32 %s86, 1
        %s550 = smul.addr %s549, 8
        %s551 = scalar_lea.vmem [#allocation6], %s550
        // Predicated region
        $region73: #{tpu_custom_call.1} parent=67 // pred_check
          %p552 = pneg %p99
        $region74: #{tpu_custom_call.1} parent=67 // pred_check_branch
          %554 = sbr.rel (%p552) target = $region76
        $region75: #{tpu_custom_call.1} parent=67 // pred_region
          %555 = dma.done %s548, 128
        $region76: #{tpu_custom_call.1} parent=67 // pred_fallthru
          _
        %s556 = sand.u32 %s40, 1
        %s557 = scalar_lea.sflag [#allocation7], %s556
        %s558 = sand.u32 %s112, 1
        %s559 = smul.addr %s558, 8
        %s560 = scalar_lea.vmem [#allocation8], %s559
        // Predicated region
        $region77: #{tpu_custom_call.1} parent=67 // pred_check
          %p561 = pneg %p125
        $region78: #{tpu_custom_call.1} parent=67 // pred_check_branch
          %563 = sbr.rel (%p561) target = $region80
        $region79: #{tpu_custom_call.1} parent=67 // pred_region
          %564 = dma.done %s557, 128
        $region80: #{tpu_custom_call.1} parent=67 // pred_fallthru
          _
        // Predicated region
        $region81: #{tpu_custom_call.1} parent=67 // pred_check
          %p565 = pneg %p146
        $region82: #{tpu_custom_call.1} parent=67 // pred_check_branch
          %567 = sbr.rel (%p565) target = $region84
        $region83: #{tpu_custom_call.1} parent=67 // pred_region
          %568 = dma.done [#allocation10], 256
        $region84: #{tpu_custom_call.1} parent=67 // pred_fallthru
          _
        // Predicated region
        $region85: #{tpu_custom_call.1} parent=67 // pred_check
          %p569 = pneg %p167
        $region86: #{tpu_custom_call.1} parent=67 // pred_check_branch
          %571 = sbr.rel (%p569) target = $region88
        $region87: #{tpu_custom_call.1} parent=67 // pred_region
          %572 = dma.done [#allocation10], 128
        $region88: #{tpu_custom_call.1} parent=67 // pred_fallthru
          _
        // Predicated region
        $region89: #{tpu_custom_call.1} parent=67 // pred_check
          %p573 = pneg %p209
        $region90: #{tpu_custom_call.1} parent=67 // pred_check_branch
          %575 = sbr.rel (%p573) target = $region92
        $region91: #{tpu_custom_call.1} parent=67 // pred_region
          %576 = dma.done [#allocation13], 512
        $region92: #{tpu_custom_call.1} parent=67 // pred_fallthru
          _
        // Predicated region
        $region93: #{tpu_custom_call.1} parent=67 // pred_check
          %p577 = pneg %p251
        $region94: #{tpu_custom_call.1} parent=67 // pred_check_branch
          %579 = sbr.rel (%p577) target = $region96
        $region95: #{tpu_custom_call.1} parent=67 // pred_region
          %580 = dma.done [#allocation13], 128
        $region96: #{tpu_custom_call.1} parent=67 // pred_fallthru
          _
        // Predicated region
        $region97: #{tpu_custom_call.1} parent=67 // pred_check
          %p581 = pneg %p272
        $region98: #{tpu_custom_call.1} parent=67 // pred_check_branch
          %583 = sbr.rel (%p581) target = $region100
        $region99: #{tpu_custom_call.1} parent=67 // pred_region
          %584 = dma.done [#allocation16], 1024
        $region100: #{tpu_custom_call.1} parent=67 // pred_fallthru
          _
        // Predicated region
        $region101: #{tpu_custom_call.1} parent=67 // pred_check
          %p585 = pneg %p314
        $region102: #{tpu_custom_call.1} parent=67 // pred_check_branch
          %587 = sbr.rel (%p585) target = $region104
        $region103: #{tpu_custom_call.1} parent=67 // pred_region
          %588 = dma.done [#allocation16], 512
        $region104: #{tpu_custom_call.1} parent=67 // pred_fallthru
          _
        %s589 = sand.u32 %s60, 1
        %s590 = scalar_lea.sflag [#allocation4], %s589
        %s591 = sand.u32 %s60, 1
        %s592 = smul.addr %s591, 8
        %s593 = scalar_lea.vmem [#allocation3], %s592
        %p594 = pneg %p73
        %p595 = pneg %p70
        %s596 = sand.u32 %s40, 1
        %s597 = scalar_lea.sflag [#allocation7], %s596
        %s598 = sand.u32 %s86, 1
        %s599 = smul.addr %s598, 8
        %s600 = scalar_lea.vmem [#allocation6], %s599
        %p601 = pneg %p99
        %p602 = pneg %p96
        %s603 = sand.u32 %s40, 1
        %s604 = scalar_lea.sflag [#allocation7], %s603
        %s605 = sand.u32 %s112, 1
        %s606 = smul.addr %s605, 8
        %s607 = scalar_lea.vmem [#allocation8], %s606
        %p608 = pneg %p125
        %p609 = pneg %p122
        %p610 = pneg %p146
        %p611 = pneg %p143
        %p612 = pneg %p167
        %p613 = pneg %p164
        %p614 = pneg %p188
        %p615 = pneg %p185
        %p616 = pneg %p209
        %p617 = pneg %p206
        %p618 = pneg %p230
        %p619 = pneg %p227
        %p620 = pneg %p251
        %p621 = pneg %p248
        %p622 = pneg %p272
        %p623 = pneg %p269
        %p624 = pneg %p293
        %p625 = pneg %p290
        %p626 = pneg %p314
        %p627 = pneg %p311
        %p628 = pneg %p340
        %p629 = pneg %p337
        %s630 = sand.u32 %s327, 1
        %s631 = scalar_lea.sflag [#allocation5], %s630
        %s632 = sand.u32 %s327, 1
        %s633 = smul.addr %s632, 8
        %s634 = scalar_lea.vmem [#allocation18], %s633
        %p635 = pneg %p368
        %p636 = pneg %p365
        %s637 = sand.u32 %s355, 1
        %s638 = scalar_lea.sflag [#allocation20], %s637
        %s639 = sand.u32 %s355, 1
        %s640 = scalar_lea.vmem [#allocation19], %s639
        %p642 = scmp.eq.s32.totalorder %s45, 0
        // Predicated region
        $region105: #{tpu_custom_call.1} parent=67 // pred_check
          %p643 = pneg %p642
        $region106: #{tpu_custom_call.1} parent=67 // pred_check_branch
          %645 = sbr.rel (%p643) target = $region108
        $region107: #{tpu_custom_call.1} parent=67 // pred_region
          %v646 = vld [vmem:[%s542] sm:$0xff]
          %v647 = vmax.f32 %v646, 0.0
          %v648 = vpack.c.bf16 %v647, %v647
          %v649 = vld [vmem:[#allocation9] sm:$0xf]
          %v650 = vld [vmem:[#allocation9 + $0x4] sm:$0xf]
          %v651 = vld [vmem:[#allocation9 + $0x8] sm:$0xf]
          %v652 = vld [vmem:[#allocation9 + $0xc] sm:$0xf]
          %v653 = vld [vmem:[%s551] sm:$0xff]
          %v654 = vpack.c.bf16 %v653, %v653
          %v655 = vld [vmem:[#allocation11] sm:$0xf]
          %v656 = vld [vmem:[#allocation11 + $0x4] sm:$0xf]
          %v659 = vunpack.c.l.b16 %v655
          %v660 = vunpack.c.l.b16 %v656
          %v661 = vpack.c.b16 %v660, %v659
          %vm663 = vcmask 130048
          %v665 = vsel %vm663, %v654, 0
          %667 = vmatprep.subr.bf16.mxu0 0
          %668 = vmatpush1.bf16.msra.mxu0 %v661
          %669 = vmatprep.subr.bf16.mxu0 0
          %670 = vmatpush1.bf16.msra.mxu0 0
          %671 = vmatprep.subr.bf16.mxu0 0
          %672 = vmatpush1.bf16.msra.mxu0 0
          %673 = vmatprep.subr.bf16.mxu0 0
          %674 = vmatpush1.bf16.msra.mxu0 0
          %675 = vmatprep.subr.bf16.mxu0 0
          %676 = vmatpush1.bf16.msra.mxu0 0
          %677 = vmatprep.subr.bf16.mxu0 0
          %678 = vmatpush1.bf16.msra.mxu0 0
          %679 = vmatprep.subr.bf16.mxu0 0
          %680 = vmatpush1.bf16.msra.mxu0 0
          %681 = vmatprep.subr.bf16.mxu0 0
          %682 = vmatpush1.bf16.msra.mxu0 0
          %683 = vmatprep.subr.bf16.mxu0 0
          %684 = vmatpush1.bf16.msra.mxu0 0
          %685 = vmatprep.subr.bf16.mxu0 0
          %686 = vmatpush1.bf16.msra.mxu0 0
          %687 = vmatprep.subr.bf16.mxu0 0
          %688 = vmatpush1.bf16.msra.mxu0 0
          %689 = vmatprep.subr.bf16.mxu0 0
          %690 = vmatpush1.bf16.msra.mxu0 0
          %691 = vmatprep.subr.bf16.mxu0 0
          %692 = vmatpush1.bf16.msra.mxu0 0
          %693 = vmatprep.subr.bf16.mxu0 0
          %694 = vmatpush1.bf16.msra.mxu0 0
          %695 = vmatprep.subr.bf16.mxu0 0
          %696 = vmatpush1.bf16.msra.mxu0 0
          %697 = vmatprep.subr.bf16.mxu0 0
          %698 = vmatpush1.bf16.msra.mxu0 0
          %699 = vmatprep.mubr.bf16.mxu0 0
          %700 = vmatmul.mubr.bf16.gmra.mrb[0].mxu0 %v665
          %v701 = vpop.f32.mrb[0].mxu0
          %v702 = vadd.f32 0.0, %v701
          %v703 = vpop.f32.mrb[0].mxu0
          %v704 = vpop.f32.mrb[0].mxu0
          %v705 = vpop.f32.mrb[0].mxu0
          %706 = vdwg.mxu0
          %v711 = vunpack.c.l.b16 %v649
          %v712 = vunpack.c.l.b16 %v650
          %v713 = vunpack.c.l.b16 %v651
          %v714 = vunpack.c.l.b16 %v652
          %v715 = vpack.c.b16 %v712, %v711
          %v716 = vpack.c.b16 %v714, %v713
          %vm719 = vcmask 261120
          %v721 = vsel %vm719, %v648, 0
          %723 = vmatprep.subr.bf16.mxu0 0
          %724 = vmatpush1.bf16.msra.mxu0 %v715
          %725 = vmatprep.subr.bf16.mxu0 0
          %726 = vmatpush1.bf16.msra.mxu0 %v716
          %727 = vmatprep.subr.bf16.mxu0 0
          %728 = vmatpush1.bf16.msra.mxu0 0
          %729 = vmatprep.subr.bf16.mxu0 0
          %730 = vmatpush1.bf16.msra.mxu0 0
          %731 = vmatprep.subr.bf16.mxu0 0
          %732 = vmatpush1.bf16.msra.mxu0 0
          %733 = vmatprep.subr.bf16.mxu0 0
          %734 = vmatpush1.bf16.msra.mxu0 0
          %735 = vmatprep.subr.bf16.mxu0 0
          %736 = vmatpush1.bf16.msra.mxu0 0
          %737 = vmatprep.subr.bf16.mxu0 0
          %738 = vmatpush1.bf16.msra.mxu0 0
          %739 = vmatprep.subr.bf16.mxu0 0
          %740 = vmatpush1.bf16.msra.mxu0 0
          %741 = vmatprep.subr.bf16.mxu0 0
          %742 = vmatpush1.bf16.msra.mxu0 0
          %743 = vmatprep.subr.bf16.mxu0 0
          %744 = vmatpush1.bf16.msra.mxu0 0
          %745 = vmatprep.subr.bf16.mxu0 0
          %746 = vmatpush1.bf16.msra.mxu0 0
          %747 = vmatprep.subr.bf16.mxu0 0
          %748 = vmatpush1.bf16.msra.mxu0 0
          %749 = vmatprep.subr.bf16.mxu0 0
          %750 = vmatpush1.bf16.msra.mxu0 0
          %751 = vmatprep.subr.bf16.mxu0 0
          %752 = vmatpush1.bf16.msra.mxu0 0
          %753 = vmatprep.subr.bf16.mxu0 0
          %754 = vmatpush1.bf16.msra.mxu0 0
          %755 = vmatprep.mubr.bf16.mxu0 0
          %756 = vmatmul.mubr.bf16.gmra.mrb[0].mxu0 %v721
          %v757 = vpop.f32.mrb[0].mxu0
          %v758 = vadd.f32 %v702, %v757
          %v759 = vpop.f32.mrb[0].mxu0
          %v760 = vpop.f32.mrb[0].mxu0
          %v761 = vpop.f32.mrb[0].mxu0
          %762 = vdwg.mxu0
          %v763 = vld [vmem:[%s5] sm:$0x1]
          %v765 = vlaneseq
          %v766 = vshrl.u32 %v765, 7
          %v767 = vsub.s32 0, %v766
          %v768 = vrot.slane %v763, %v767
          %v770 = vadd.f32 %v758, %v768
          %771 = vst.msk [vmem:[#allocation2] sm:$0xff] %vm719, %v770
        $region108: #{tpu_custom_call.1} parent=67 // pred_fallthru
          _
        %v772 = vld [vmem:[#allocation2] sm:$0xff]
        %v773 = vpack.c.bf16 %v772, %v772
        %v774 = vld [vmem:[%s560] sm:$0xf]
        %v775 = vunpack.c.l.bf16 %v774
        %s776 = scalar_lea.vmem %s560, 4 [#allocation8]
        %v777 = vld [vmem:[%s776] sm:$0xf]
        %v778 = vunpack.c.l.bf16 %v777
        %s779 = smul.u32 %s45, 4
        %s780 = smul.addr %s779, 4
        %s781 = scalar_lea.vmem [#allocation12], %s780
        %v782 = vld [vmem:[%s781] sm:$0xf]
        %v783 = vld [vmem:[%s781 + $0x4] sm:$0xf]
        %v784 = vld [vmem:[%s781 + $0x8] sm:$0xf]
        %v785 = vld [vmem:[%s781 + $0xc] sm:$0xf]
        %s786 = scalar_lea.vmem %s7, %s45
        %v787 = vld [vmem:[%s786] sm:$0x1]
        %v789 = vlaneseq
        %v790 = vshrl.u32 %v789, 7
        %v791 = vsub.s32 0, %v790
        %v792 = vrot.slane %v787, %v791
        %v798 = vunpack.c.l.b16 %v782
        %v799 = vunpack.c.l.b16 %v783
        %v800 = vunpack.c.l.b16 %v784
        %v801 = vunpack.c.l.b16 %v785
        %v802 = vpack.c.b16 %v799, %v798
        %v803 = vpack.c.b16 %v801, %v800
        %vm806 = vcmask 261120
        %v808 = vsel %vm806, %v773, 0
        %810 = vmatprep.subr.bf16.mxu0 0
        %811 = vmatpush1.bf16.msra.mxu0 %v802
        %812 = vmatprep.subr.bf16.mxu0 0
        %813 = vmatpush1.bf16.msra.mxu0 %v803
        %814 = vmatprep.subr.bf16.mxu0 0
        %815 = vmatpush1.bf16.msra.mxu0 0
        %816 = vmatprep.subr.bf16.mxu0 0
        %817 = vmatpush1.bf16.msra.mxu0 0
        %818 = vmatprep.subr.bf16.mxu0 0
        %819 = vmatpush1.bf16.msra.mxu0 0
        %820 = vmatprep.subr.bf16.mxu0 0
        %821 = vmatpush1.bf16.msra.mxu0 0
        %822 = vmatprep.subr.bf16.mxu0 0
        %823 = vmatpush1.bf16.msra.mxu0 0
        %824 = vmatprep.subr.bf16.mxu0 0
        %825 = vmatpush1.bf16.msra.mxu0 0
        %826 = vmatprep.subr.bf16.mxu0 0
        %827 = vmatpush1.bf16.msra.mxu0 0
        %828 = vmatprep.subr.bf16.mxu0 0
        %829 = vmatpush1.bf16.msra.mxu0 0
        %830 = vmatprep.subr.bf16.mxu0 0
        %831 = vmatpush1.bf16.msra.mxu0 0
        %832 = vmatprep.subr.bf16.mxu0 0
        %833 = vmatpush1.bf16.msra.mxu0 0
        %834 = vmatprep.subr.bf16.mxu0 0
        %835 = vmatpush1.bf16.msra.mxu0 0
        %836 = vmatprep.subr.bf16.mxu0 0
        %837 = vmatpush1.bf16.msra.mxu0 0
        %838 = vmatprep.subr.bf16.mxu0 0
        %839 = vmatpush1.bf16.msra.mxu0 0
        %840 = vmatprep.subr.bf16.mxu0 0
        %841 = vmatpush1.bf16.msra.mxu0 0
        %842 = vmatprep.mubr.bf16.mxu0 0
        %843 = vmatmul.mubr.bf16.gmra.mrb[0].mxu0 %v808
        %v844 = vpop.f32.mrb[0].mxu0
        %v845 = vadd.f32 %v792, %v844
        %v846 = vpop.f32.mrb[0].mxu0
        %v847 = vpop.f32.mrb[0].mxu0
        %v848 = vpop.f32.mrb[0].mxu0
        %849 = vdwg.mxu0
        %v850 = vpack.c.bf16 %v845, %v845
        %s851 = scalar_lea.vmem [#allocation14], %s779
        %v852 = vld [vmem:[%s851] sm:$0xf]
        %v853 = vlaneseq
        %v854 = vshrl.u32 %v853, 7
        %v855 = vsub.s32 0, %v854
        %v856 = vrot.slane %v852, %v855
        %v857 = vmul.f32 %v772, %v856
        %v858 = vsel %vm806, %v857, 0.0
        %859 = vadd.xlane.f32.xlu0 %v858
        %v860 = vpop.xlane.xlu0 %859
        %v861 = vlaneseq
        %v862 = vshrl.u32 %v861, 7
        %v863 = vsub.s32 1, %v862
        %v864 = vrot.slane %v852, %v863
        %v865 = vmul.f32 %v772, %v864
        %v866 = vsel %vm806, %v865, 0.0
        %867 = vadd.xlane.f32.xlu0 %v866
        %v868 = vpop.xlane.xlu0 %867
        %v869 = vlaneseq
        %v870 = vshrl.u32 %v869, 7
        %v871 = vsub.s32 2, %v870
        %v872 = vrot.slane %v852, %v871
        %v873 = vmul.f32 %v772, %v872
        %v874 = vsel %vm806, %v873, 0.0
        %875 = vadd.xlane.f32.xlu0 %v874
        %v876 = vpop.xlane.xlu0 %875
        %v877 = vlaneseq
        %v878 = vshrl.u32 %v877, 7
        %v879 = vsub.s32 3, %v878
        %v880 = vrot.slane %v852, %v879
        %v881 = vmul.f32 %v772, %v880
        %v882 = vsel %vm806, %v881, 0.0
        %883 = vadd.xlane.f32.xlu0 %v882
        %v884 = vpop.xlane.xlu0 %883
        %v886 = vlaneseq
        %v887 = vand.u32 %v886, 127
        %v888 = vlaneseq
        %v889 = vshrl.u32 %v888, 7
        %v890 = vsub.s32 %v887, %v889
        %v891 = vrot.slane %v868, %v890
        %vm892 = vcmask 1042434
        %v893 = vsel %vm892, %v891, %v891
        %vm894 = vcmask 1043459
        %v895 = vsel %vm894, %v891, %v893
        %vm896 = vcmask 1044484
        %v897 = vsel %vm896, %v891, %v895
        %vm898 = vcmask 1045509
        %v899 = vsel %vm898, %v891, %v897
        %vm900 = vcmask 1046534
        %v901 = vsel %vm900, %v891, %v899
        %vm902 = vcmask 1047559
        %v903 = vsel %vm902, %v891, %v901
        %v905 = vadd.f32 %v860, %v903
        %vm906 = vcmp.gt.f32.partialorder %v905, 0.0
        %v907 = vmul.f32 %v905, 0.2
        %v908 = vsel %vm906, %v905, %v907
        %v909 = vsub.f32 %v775, 1.0
        %v910 = vmul.f32 %v909, 1e+09
        %v911 = vadd.f32 %v908, %v910
        %vm912 = vcmask 64512
        %v913 = vsel %vm912, %v911, -inf
        %914 = vmax.xlane.f32.xlu0 %v913
        %v915 = vpop.xlane.xlu0 %914
        %v916 = vsub.f32 %v911, %v915
        %v917 = vmul.f32 %v916, 1.442695
        %v918 = vpow.pop %v917
        %v919 = vmul.f32 %v918, %v775
        %v920 = vsel %vm912, %v919, 0.0
        %921 = vadd.xlane.f32.xlu0 %v920
        %v922 = vpop.xlane.xlu0 %921
        %v923 = vadd.f32 %v922, 1e-09
        %v924 = vpack.c.bf16 %v919, %v919
        %v926 = vsel %vm912, %v924, 0
        %vm928 = vcmask 1043456
        %v930 = vsel %vm928, %v850, 0
        %932 = vmatprep.subr.bf16.mxu0 0
        %933 = vmatpush1.bf16.msra.mxu0 %v930
        %934 = vmatprep.subr.bf16.mxu0 0
        %935 = vmatpush1.bf16.msra.mxu0 0
        %936 = vmatprep.subr.bf16.mxu0 0
        %937 = vmatpush1.bf16.msra.mxu0 0
        %938 = vmatprep.subr.bf16.mxu0 0
        %939 = vmatpush1.bf16.msra.mxu0 0
        %940 = vmatprep.subr.bf16.mxu0 0
        %941 = vmatpush1.bf16.msra.mxu0 0
        %942 = vmatprep.subr.bf16.mxu0 0
        %943 = vmatpush1.bf16.msra.mxu0 0
        %944 = vmatprep.subr.bf16.mxu0 0
        %945 = vmatpush1.bf16.msra.mxu0 0
        %946 = vmatprep.subr.bf16.mxu0 0
        %947 = vmatpush1.bf16.msra.mxu0 0
        %948 = vmatprep.subr.bf16.mxu0 0
        %949 = vmatpush1.bf16.msra.mxu0 0
        %950 = vmatprep.subr.bf16.mxu0 0
        %951 = vmatpush1.bf16.msra.mxu0 0
        %952 = vmatprep.subr.bf16.mxu0 0
        %953 = vmatpush1.bf16.msra.mxu0 0
        %954 = vmatprep.subr.bf16.mxu0 0
        %955 = vmatpush1.bf16.msra.mxu0 0
        %956 = vmatprep.subr.bf16.mxu0 0
        %957 = vmatpush1.bf16.msra.mxu0 0
        %958 = vmatprep.subr.bf16.mxu0 0
        %959 = vmatpush1.bf16.msra.mxu0 0
        %960 = vmatprep.subr.bf16.mxu0 0
        %961 = vmatpush1.bf16.msra.mxu0 0
        %962 = vmatprep.subr.bf16.mxu0 0
        %963 = vmatpush1.bf16.msra.mxu0 0
        %964 = vmatprep.mubr.bf16.mxu0 0
        %965 = vmatmul.mubr.bf16.gmra.mrb[0].mxu0 %v926
        %v966 = vpop.f32.mrb[0].mxu0
        %v967 = vadd.f32 0.0, %v966
        %v968 = vpop.f32.mrb[0].mxu0
        %v969 = vpop.f32.mrb[0].mxu0
        %v970 = vpop.f32.mrb[0].mxu0
        %971 = vdwg.mxu0
        %v972 = vrcp.pop %v923
        %v973 = vmul.f32 %v967, %v972
        %v975 = vlaneseq
        %v976 = vshrl.u32 %v975, 7
        %v977 = vsub.s32 %v887, %v976
        %v978 = vrot.slane %v884, %v977
        %v979 = vsel %vm892, %v978, %v978
        %v980 = vsel %vm894, %v978, %v979
        %v981 = vsel %vm896, %v978, %v980
        %v982 = vsel %vm898, %v978, %v981
        %v983 = vsel %vm900, %v978, %v982
        %v984 = vsel %vm902, %v978, %v983
        %v986 = vadd.f32 %v876, %v984
        %vm987 = vcmp.gt.f32.partialorder %v986, 0.0
        %v988 = vmul.f32 %v986, 0.2
        %v989 = vsel %vm987, %v986, %v988
        %v990 = vsub.f32 %v778, 1.0
        %v991 = vmul.f32 %v990, 1e+09
        %v992 = vadd.f32 %v989, %v991
        %v993 = vsel %vm912, %v992, -inf
        %994 = vmax.xlane.f32.xlu0 %v993
        %v995 = vpop.xlane.xlu0 %994
        %v996 = vsub.f32 %v992, %v995
        %v997 = vmul.f32 %v996, 1.442695
        %v998 = vpow.pop %v997
        %v999 = vmul.f32 %v998, %v778
        %v1000 = vsel %vm912, %v999, 0.0
        %1001 = vadd.xlane.f32.xlu0 %v1000
        %v1002 = vpop.xlane.xlu0 %1001
        %v1003 = vadd.f32 %v1002, 1e-09
        %v1004 = vpack.c.bf16 %v999, %v999
        %1006 = vrot.lane.b32.xlu0 %v850, 96
        %v1007 = vpop.permute.xlu0 %1006
        %v1009 = vsel %vm912, %v1004, 0
        %v1012 = vsel %vm928, %v1007, 0
        %1014 = vmatprep.subr.bf16.mxu0 0
        %1015 = vmatpush1.bf16.msra.mxu0 %v1012
        %1016 = vmatprep.subr.bf16.mxu0 0
        %1017 = vmatpush1.bf16.msra.mxu0 0
        %1018 = vmatprep.subr.bf16.mxu0 0
        %1019 = vmatpush1.bf16.msra.mxu0 0
        %1020 = vmatprep.subr.bf16.mxu0 0
        %1021 = vmatpush1.bf16.msra.mxu0 0
        %1022 = vmatprep.subr.bf16.mxu0 0
        %1023 = vmatpush1.bf16.msra.mxu0 0
        %1024 = vmatprep.subr.bf16.mxu0 0
        %1025 = vmatpush1.bf16.msra.mxu0 0
        %1026 = vmatprep.subr.bf16.mxu0 0
        %1027 = vmatpush1.bf16.msra.mxu0 0
        %1028 = vmatprep.subr.bf16.mxu0 0
        %1029 = vmatpush1.bf16.msra.mxu0 0
        %1030 = vmatprep.subr.bf16.mxu0 0
        %1031 = vmatpush1.bf16.msra.mxu0 0
        %1032 = vmatprep.subr.bf16.mxu0 0
        %1033 = vmatpush1.bf16.msra.mxu0 0
        %1034 = vmatprep.subr.bf16.mxu0 0
        %1035 = vmatpush1.bf16.msra.mxu0 0
        %1036 = vmatprep.subr.bf16.mxu0 0
        %1037 = vmatpush1.bf16.msra.mxu0 0
        %1038 = vmatprep.subr.bf16.mxu0 0
        %1039 = vmatpush1.bf16.msra.mxu0 0
        %1040 = vmatprep.subr.bf16.mxu0 0
        %1041 = vmatpush1.bf16.msra.mxu0 0
        %1042 = vmatprep.subr.bf16.mxu0 0
        %1043 = vmatpush1.bf16.msra.mxu0 0
        %1044 = vmatprep.subr.bf16.mxu0 0
        %1045 = vmatpush1.bf16.msra.mxu0 0
        %1046 = vmatprep.mubr.bf16.mxu0 0
        %1047 = vmatmul.mubr.bf16.gmra.mrb[0].mxu0 %v1009
        %v1048 = vpop.f32.mrb[0].mxu0
        %v1049 = vadd.f32 0.0, %v1048
        %v1050 = vpop.f32.mrb[0].mxu0
        %v1051 = vpop.f32.mrb[0].mxu0
        %v1052 = vpop.f32.mrb[0].mxu0
        %1053 = vdwg.mxu0
        %v1054 = vrcp.pop %v1003
        %v1055 = vmul.f32 %v1049, %v1054
        %s1056 = smul.u32 %s45, 8
        %s1057 = smul.addr %s1056, 4
        %s1058 = scalar_lea.vmem [#allocation15], %s1057
        %v1059 = vld [vmem:[%s1058] sm:$0xf]
        %v1060 = vld [vmem:[%s1058 + $0x4] sm:$0xf]
        %v1061 = vld [vmem:[%s1058 + $0x8] sm:$0xf]
        %v1062 = vld [vmem:[%s1058 + $0xc] sm:$0xf]
        %v1063 = vld [vmem:[%s1058 + $0x10] sm:$0xf]
        %v1064 = vld [vmem:[%s1058 + $0x14] sm:$0xf]
        %v1065 = vld [vmem:[%s1058 + $0x18] sm:$0xf]
        %v1066 = vld [vmem:[%s1058 + $0x1c] sm:$0xf]
        %v1067 = vpack.c.bf16 %v973, %v973
        %v1068 = vpack.c.bf16 %v1055, %v1055
        %v1073 = vunpack.c.l.b16 %v1063
        %v1074 = vunpack.c.l.b16 %v1064
        %v1075 = vunpack.c.l.b16 %v1065
        %v1076 = vunpack.c.l.b16 %v1066
        %v1077 = vpack.c.b16 %v1074, %v1073
        %v1078 = vpack.c.b16 %v1076, %v1075
        %v1082 = vsel %vm806, %v1068, 0
        %1084 = vmatprep.subr.bf16.mxu0 0
        %1085 = vmatpush1.bf16.msra.mxu0 %v1077
        %1086 = vmatprep.subr.bf16.mxu0 0
        %1087 = vmatpush1.bf16.msra.mxu0 %v1078
        %1088 = vmatprep.subr.bf16.mxu0 0
        %1089 = vmatpush1.bf16.msra.mxu0 0
        %1090 = vmatprep.subr.bf16.mxu0 0
        %1091 = vmatpush1.bf16.msra.mxu0 0
        %1092 = vmatprep.subr.bf16.mxu0 0
        %1093 = vmatpush1.bf16.msra.mxu0 0
        %1094 = vmatprep.subr.bf16.mxu0 0
        %1095 = vmatpush1.bf16.msra.mxu0 0
        %1096 = vmatprep.subr.bf16.mxu0 0
        %1097 = vmatpush1.bf16.msra.mxu0 0
        %1098 = vmatprep.subr.bf16.mxu0 0
        %1099 = vmatpush1.bf16.msra.mxu0 0
        %1100 = vmatprep.subr.bf16.mxu0 0
        %1101 = vmatpush1.bf16.msra.mxu0 0
        %1102 = vmatprep.subr.bf16.mxu0 0
        %1103 = vmatpush1.bf16.msra.mxu0 0
        %1104 = vmatprep.subr.bf16.mxu0 0
        %1105 = vmatpush1.bf16.msra.mxu0 0
        %1106 = vmatprep.subr.bf16.mxu0 0
        %1107 = vmatpush1.bf16.msra.mxu0 0
        %1108 = vmatprep.subr.bf16.mxu0 0
        %1109 = vmatpush1.bf16.msra.mxu0 0
        %1110 = vmatprep.subr.bf16.mxu0 0
        %1111 = vmatpush1.bf16.msra.mxu0 0
        %1112 = vmatprep.subr.bf16.mxu0 0
        %1113 = vmatpush1.bf16.msra.mxu0 0
        %1114 = vmatprep.subr.bf16.mxu0 0
        %1115 = vmatpush1.bf16.msra.mxu0 0
        %1116 = vmatprep.mubr.bf16.mxu0 0
        %1117 = vmatmul.mubr.bf16.gmra.mrb[0].mxu0 %v1082
        %v1118 = vpop.f32.mrb[0].mxu0
        %v1119 = vadd.f32 0.0, %v1118
        %v1120 = vpop.f32.mrb[0].mxu0
        %v1121 = vpop.f32.mrb[0].mxu0
        %v1122 = vpop.f32.mrb[0].mxu0
        %1123 = vdwg.mxu0
        %v1128 = vunpack.c.l.b16 %v1059
        %v1129 = vunpack.c.l.b16 %v1060
        %v1130 = vunpack.c.l.b16 %v1061
        %v1131 = vunpack.c.l.b16 %v1062
        %v1132 = vpack.c.b16 %v1129, %v1128
        %v1133 = vpack.c.b16 %v1131, %v1130
        %v1137 = vsel %vm806, %v1067, 0
        %1139 = vmatprep.subr.bf16.mxu0 0
        %1140 = vmatpush1.bf16.msra.mxu0 %v1132
        %1141 = vmatprep.subr.bf16.mxu0 0
        %1142 = vmatpush1.bf16.msra.mxu0 %v1133
        %1143 = vmatprep.subr.bf16.mxu0 0
        %1144 = vmatpush1.bf16.msra.mxu0 0
        %1145 = vmatprep.subr.bf16.mxu0 0
        %1146 = vmatpush1.bf16.msra.mxu0 0
        %1147 = vmatprep.subr.bf16.mxu0 0
        %1148 = vmatpush1.bf16.msra.mxu0 0
        %1149 = vmatprep.subr.bf16.mxu0 0
        %1150 = vmatpush1.bf16.msra.mxu0 0
        %1151 = vmatprep.subr.bf16.mxu0 0
        %1152 = vmatpush1.bf16.msra.mxu0 0
        %1153 = vmatprep.subr.bf16.mxu0 0
        %1154 = vmatpush1.bf16.msra.mxu0 0
        %1155 = vmatprep.subr.bf16.mxu0 0
        %1156 = vmatpush1.bf16.msra.mxu0 0
        %1157 = vmatprep.subr.bf16.mxu0 0
        %1158 = vmatpush1.bf16.msra.mxu0 0
        %1159 = vmatprep.subr.bf16.mxu0 0
        %1160 = vmatpush1.bf16.msra.mxu0 0
        %1161 = vmatprep.subr.bf16.mxu0 0
        %1162 = vmatpush1.bf16.msra.mxu0 0
        %1163 = vmatprep.subr.bf16.mxu0 0
        %1164 = vmatpush1.bf16.msra.mxu0 0
        %1165 = vmatprep.subr.bf16.mxu0 0
        %1166 = vmatpush1.bf16.msra.mxu0 0
        %1167 = vmatprep.subr.bf16.mxu0 0
        %1168 = vmatpush1.bf16.msra.mxu0 0
        %1169 = vmatprep.subr.bf16.mxu0 0
        %1170 = vmatpush1.bf16.msra.mxu0 0
        %1171 = vmatprep.mubr.bf16.mxu0 0
        %1172 = vmatmul.mubr.bf16.gmra.mrb[0].mxu0 %v1137
        %v1173 = vpop.f32.mrb[0].mxu0
        %v1174 = vadd.f32 %v1119, %v1173
        %v1175 = vpop.f32.mrb[0].mxu0
        %v1176 = vpop.f32.mrb[0].mxu0
        %v1177 = vpop.f32.mrb[0].mxu0
        %1178 = vdwg.mxu0
        %s1179 = smul.addr %s779, 4
        %s1180 = scalar_lea.vmem %s10, %s1179
        %v1181 = vld [vmem:[%s1180] sm:$0xf]
        %v1182 = vld [vmem:[%s1180 + $0x4] sm:$0xf]
        %v1183 = vld [vmem:[%s1180 + $0x8] sm:$0xf]
        %v1184 = vld [vmem:[%s1180 + $0xc] sm:$0xf]
        %v1189 = vunpack.c.l.b16 %v1181
        %v1190 = vunpack.c.l.b16 %v1182
        %v1191 = vunpack.c.l.b16 %v1183
        %v1192 = vunpack.c.l.b16 %v1184
        %v1193 = vpack.c.b16 %v1190, %v1189
        %v1194 = vpack.c.b16 %v1192, %v1191
        %1197 = vmatprep.subr.bf16.mxu0 0
        %1198 = vmatpush1.bf16.msra.mxu0 %v1193
        %1199 = vmatprep.subr.bf16.mxu0 0
        %1200 = vmatpush1.bf16.msra.mxu0 %v1194
        %1201 = vmatprep.subr.bf16.mxu0 0
        %1202 = vmatpush1.bf16.msra.mxu0 0
        %1203 = vmatprep.subr.bf16.mxu0 0
        %1204 = vmatpush1.bf16.msra.mxu0 0
        %1205 = vmatprep.subr.bf16.mxu0 0
        %1206 = vmatpush1.bf16.msra.mxu0 0
        %1207 = vmatprep.subr.bf16.mxu0 0
        %1208 = vmatpush1.bf16.msra.mxu0 0
        %1209 = vmatprep.subr.bf16.mxu0 0
        %1210 = vmatpush1.bf16.msra.mxu0 0
        %1211 = vmatprep.subr.bf16.mxu0 0
        %1212 = vmatpush1.bf16.msra.mxu0 0
        %1213 = vmatprep.subr.bf16.mxu0 0
        %1214 = vmatpush1.bf16.msra.mxu0 0
        %1215 = vmatprep.subr.bf16.mxu0 0
        %1216 = vmatpush1.bf16.msra.mxu0 0
        %1217 = vmatprep.subr.bf16.mxu0 0
        %1218 = vmatpush1.bf16.msra.mxu0 0
        %1219 = vmatprep.subr.bf16.mxu0 0
        %1220 = vmatpush1.bf16.msra.mxu0 0
        %1221 = vmatprep.subr.bf16.mxu0 0
        %1222 = vmatpush1.bf16.msra.mxu0 0
        %1223 = vmatprep.subr.bf16.mxu0 0
        %1224 = vmatpush1.bf16.msra.mxu0 0
        %1225 = vmatprep.subr.bf16.mxu0 0
        %1226 = vmatpush1.bf16.msra.mxu0 0
        %1227 = vmatprep.subr.bf16.mxu0 0
        %1228 = vmatpush1.bf16.msra.mxu0 0
        %1229 = vmatprep.mubr.bf16.mxu0 0
        %1230 = vmatmul.mubr.bf16.gmra.mrb[0].mxu0 %v808
        %v1231 = vpop.f32.mrb[0].mxu0
        %v1232 = vadd.f32 0.0, %v1231
        %v1233 = vpop.f32.mrb[0].mxu0
        %v1234 = vpop.f32.mrb[0].mxu0
        %v1235 = vpop.f32.mrb[0].mxu0
        %1236 = vdwg.mxu0
        %v1237 = vadd.f32 %v1174, %v1232
        %v1238 = vxor.u32 %v1237, 2147483648
        %v1239 = vmul.f32 %v1238, 1.442695
        %v1240 = vpow.pop %v1239
        %v1241 = vadd.f32 %v1240, 1.0
        %v1242 = vrcp.pop %v1241
        %v1243 = vmul.f32 1.0, %v1242
        %1245 = vrot.lane.b32.xlu0 %v772, 32
        %v1246 = vpop.permute.xlu0 %1245
        %v1248 = vmul.f32 %v1243, %v1246
        %v1249 = vpack.c.bf16 %v1248, %v1248
        %s1250 = smul.addr %s779, 4
        %s1251 = scalar_lea.vmem [#allocation17], %s1250
        %v1252 = vld [vmem:[%s1251] sm:$0xf]
        %v1253 = vld [vmem:[%s1251 + $0x4] sm:$0xf]
        %v1254 = vld [vmem:[%s1251 + $0x8] sm:$0xf]
        %v1255 = vld [vmem:[%s1251 + $0xc] sm:$0xf]
        %1257 = vrot.lane.b32.xlu0 %v1249, 96
        %v1258 = vpop.permute.xlu0 %1257
        %v1263 = vunpack.c.l.b16 %v1252
        %v1264 = vunpack.c.l.b16 %v1253
        %v1265 = vunpack.c.l.b16 %v1254
        %v1266 = vunpack.c.l.b16 %v1255
        %v1267 = vpack.c.b16 %v1264, %v1263
        %v1268 = vpack.c.b16 %v1266, %v1265
        %v1272 = vsel %vm806, %v1258, 0
        %1274 = vmatprep.subr.bf16.mxu0 0
        %1275 = vmatpush1.bf16.msra.mxu0 %v1267
        %1276 = vmatprep.subr.bf16.mxu0 0
        %1277 = vmatpush1.bf16.msra.mxu0 %v1268
        %1278 = vmatprep.subr.bf16.mxu0 0
        %1279 = vmatpush1.bf16.msra.mxu0 0
        %1280 = vmatprep.subr.bf16.mxu0 0
        %1281 = vmatpush1.bf16.msra.mxu0 0
        %1282 = vmatprep.subr.bf16.mxu0 0
        %1283 = vmatpush1.bf16.msra.mxu0 0
        %1284 = vmatprep.subr.bf16.mxu0 0
        %1285 = vmatpush1.bf16.msra.mxu0 0
        %1286 = vmatprep.subr.bf16.mxu0 0
        %1287 = vmatpush1.bf16.msra.mxu0 0
        %1288 = vmatprep.subr.bf16.mxu0 0
        %1289 = vmatpush1.bf16.msra.mxu0 0
        %1290 = vmatprep.subr.bf16.mxu0 0
        %1291 = vmatpush1.bf16.msra.mxu0 0
        %1292 = vmatprep.subr.bf16.mxu0 0
        %1293 = vmatpush1.bf16.msra.mxu0 0
        %1294 = vmatprep.subr.bf16.mxu0 0
        %1295 = vmatpush1.bf16.msra.mxu0 0
        %1296 = vmatprep.subr.bf16.mxu0 0
        %1297 = vmatpush1.bf16.msra.mxu0 0
        %1298 = vmatprep.subr.bf16.mxu0 0
        %1299 = vmatpush1.bf16.msra.mxu0 0
        %1300 = vmatprep.subr.bf16.mxu0 0
        %1301 = vmatpush1.bf16.msra.mxu0 0
        %1302 = vmatprep.subr.bf16.mxu0 0
        %1303 = vmatpush1.bf16.msra.mxu0 0
        %1304 = vmatprep.subr.bf16.mxu0 0
        %1305 = vmatpush1.bf16.msra.mxu0 0
        %1306 = vmatprep.mubr.bf16.mxu0 0
        %1307 = vmatmul.mubr.bf16.gmra.mrb[0].mxu0 %v1272
        %v1308 = vpop.f32.mrb[0].mxu0
        %v1309 = vadd.f32 0.0, %v1308
        %v1310 = vpop.f32.mrb[0].mxu0
        %v1311 = vpop.f32.mrb[0].mxu0
        %v1312 = vpop.f32.mrb[0].mxu0
        %1313 = vdwg.mxu0
        %1315 = vrot.lane.b32.xlu0 %v1309, 64
        %v1316 = vpop.permute.xlu0 %1315
        %v1318 = vadd.f32 %v1174, %v1316
        %v1319 = vtanh.pop %v1318
        %v1320 = vsub.f32 1.0, %v1243
        %v1321 = vmul.f32 %v1320, %v772
        %1323 = vrot.lane.b32.xlu0 %v1319, 64
        %v1324 = vpop.permute.xlu0 %1323
        %v1326 = vmul.f32 %v1243, %v1324
        %v1327 = vadd.f32 %v1321, %v1326
        %1328 = vst.msk [vmem:[#allocation2] sm:$0xff] %vm806, %v1327
        %1329 = vst.msk [vmem:[%s634] sm:$0xff] %vm806, %v1327
        %vm1330 = vcmask 253952
        %1331 = vst.msk [vmem:[%s640] sm:$0x1] %vm1330, %v1327
        %s1332 = sand.u32 %s327, 1
        %s1333 = scalar_lea.sflag [#allocation5], %s1332
        %s1334 = sand.u32 %s327, 1
        %s1335 = smul.addr %s1334, 8
        %s1336 = scalar_lea.vmem [#allocation18], %s1335
        %s1337 = sand.u32 %s355, 1
        %s1338 = scalar_lea.sflag [#allocation20], %s1337
        %s1339 = sand.u32 %s355, 1
        %s1340 = scalar_lea.vmem [#allocation19], %s1339
        // Predicated region
        $region109: #{tpu_custom_call.1} parent=67 // pred_check
          %p1341 = pneg %p337
        $region110: #{tpu_custom_call.1} parent=67 // pred_check_branch
          %1343 = sbr.rel (%p1341) target = $region112
        $region111: #{tpu_custom_call.1} parent=67 // pred_region
          %s1345 = ssub.s32 128, 128
          %1346 = vsyncadd %s1333, %s1345
          %s1347 = smul.addr %s44, 128
          %s1348 = scalar_lea.hbm %s12, %s1347
          %s1350 = sshll.u32 %s1336, 4
          %s1351 = int_to_ptr.vmem [resolvable:$true] %s1350
          %1353 = dma.vmem_to_hbm [thread:$0]  %s1351, 128, %s1348, %s1333
        $region112: #{tpu_custom_call.1} parent=67 // pred_fallthru
          _
        // Predicated region
        $region113: #{tpu_custom_call.1} parent=67 // pred_check
          %p1354 = pneg %p365
        $region114: #{tpu_custom_call.1} parent=67 // pred_check_branch
          %1356 = sbr.rel (%p1354) target = $region116
        $region115: #{tpu_custom_call.1} parent=67 // pred_region
          %s1358 = ssub.s32 16, 16
          %1359 = vsyncadd %s1338, %s1358
          %s1360 = smul.addr %s45, 2
          %s1361 = sadd.s32 %s44, %s1360
          %s1362 = smul.addr %s1361, 16
          %s1363 = scalar_lea.hbm %s13, %s1362
          %s1365 = sshll.u32 %s1340, 4
          %s1366 = int_to_ptr.vmem [resolvable:$true] %s1365
          %1368 = dma.vmem_to_hbm [thread:$0]  %s1366, 16, %s1363, %s1338
        $region116: #{tpu_custom_call.1} parent=67 // pred_fallthru
          _
      $region68: #{tpu_custom_call.1} parent=5 // pred_fallthru
        _
      %p1369 = scmp.le.s32.totalorder 2, %s35
      // Predicated region
      $region117: #{tpu_custom_call.1} parent=5 // pred_check
        %p1370 = pneg %p1369
      $region118: #{tpu_custom_call.1} parent=5 // pred_check_branch
        %1372 = sbr.rel (%p1370) target = $region120
      $region119: #{tpu_custom_call.1} parent=5 // pred_region
        %s1373 = ssub.s32 %s35, 2
        // Predicated region
        $region121: #{tpu_custom_call.1} parent=119 // pred_check
          %p1374 = pneg %p343
        $region122: #{tpu_custom_call.1} parent=119 // pred_check_branch
          %1376 = sbr.rel (%p1374) target = $region124
        $region123: #{tpu_custom_call.1} parent=119 // pred_region
          %s1377 = sand.u32 %s328, 1
          %s1378 = scalar_lea.sflag [#allocation5], %s1377
          %s1379 = sand.u32 %s328, 1
          %s1380 = smul.addr %s1379, 8
          %s1381 = scalar_lea.vmem [#allocation18], %s1380
          %1382 = dma.done %s1378, 128
        $region124: #{tpu_custom_call.1} parent=119 // pred_fallthru
          _
        // Predicated region
        $region125: #{tpu_custom_call.1} parent=119 // pred_check
          %p1383 = pneg %p371
        $region126: #{tpu_custom_call.1} parent=119 // pred_check_branch
          %1385 = sbr.rel (%p1383) target = $region128
        $region127: #{tpu_custom_call.1} parent=119 // pred_region
          %s1386 = sand.u32 %s356, 1
          %s1387 = scalar_lea.sflag [#allocation20], %s1386
          %s1388 = sand.u32 %s356, 1
          %s1389 = scalar_lea.vmem [#allocation19], %s1388
          %1390 = dma.done %s1387, 16
        $region128: #{tpu_custom_call.1} parent=119 // pred_fallthru
          _
      $region120: #{tpu_custom_call.1} parent=5 // pred_fallthru
        _
    $region6: #{tpu_custom_call.1} parent=1 // loop_footer
      %s39 = sadd.s32 1, %s35
    $region7: #{tpu_custom_call.1} parent=1 // loop_footer_branch
      %34 = sbr.rel target = $region3
    $region8: #{tpu_custom_call.1} parent=1 // loop_exit
      _
    %1391 = vsyncpa [#allocation4], 1
    %s1392 = scalar_lea.sflag [#allocation4], 1
    %1393 = vsyncpa %s1392, 1
    %1394 = vsyncpa [#allocation7], 1
    %s1395 = scalar_lea.sflag [#allocation7], 1
    %1396 = vsyncpa %s1395, 1
    %1397 = vsyncpa [#allocation10], 1
    %1398 = vsyncpa [#allocation13], 1
    %1399 = vsyncpa [#allocation16], 1
    %1400 = vsyncpa [#allocation5], 1
    %s1401 = scalar_lea.sflag [#allocation5], 1
    %1402 = vsyncpa %s1401, 1
    %1403 = vsyncpa [#allocation20], 1
    %s1404 = scalar_lea.sflag [#allocation20], 1
    %1405 = vsyncpa %s1404, 1

</llo_original>
